<compile_context>
chip_gen: v6e
topology: v6e:2x2x1
jax: 0.10.0
libtpu: 0.0.40
codegen_flags: <defaults>
</compile_context>

<pallas_src>
import jax
import jax.numpy as jnp
from jax import lax
from jax.experimental import pallas as pl
from jax.experimental.pallas import tpu as pltpu


def _round_up(a, m):
    return ((a + m - 1) // m) * m


def lstm_pallas(x, layer_params, ln_w, ln_b, *,
                matmul_dtype=jnp.float32,
                recurrent_dtype=jnp.bfloat16,
                force_blocked=False):
    """x: (B, T, input_size). layer_params[l] = (W_ih, W_hh, b_ih, b_hh) as in PyTorch.

    Returns LayerNorm(LSTM(x)[:, -1, :]) as float32.
      matmul_dtype:    operand dtype of the hoisted input projections (f32 or bf16).
      recurrent_dtype: operand dtype of the per-step h @ W_hh dot (bf16 by default: single
                       MXU pass on the serial chain; accumulation is always f32).
      force_blocked:   force the 128-lane gate-blocked layout even for small H (testing).
    """
    x = jnp.asarray(x, jnp.float32)
    B, T, In = x.shape
    L = len(layer_params)
    H = layer_params[0][1].shape[1]          # W_hh: (4H, H)
    BP = _round_up(B, 8)                     # sublane-aligned batch rows (f32)

    compact = (H < 128) and ((4 * H) % 128 == 0) and (not force_blocked)
    if compact:
        GW = H                 # per-gate lane width in the packed layout
        HW = 4 * H             # carried h/c vreg width (real h lives in lanes [0:H))
        perm = (1, 0, 3, 2)    # packed gate blocks = (f, i, o, g); see roll notes in kernel
    else:
        GW = _round_up(H, 128) # each gate in its own 128-lane-aligned block
        HW = GW
        perm = (0, 1, 2, 3)    # PyTorch order (i, f, g, o)
    G = 4 * GW                 # gate / gx feature width

    # --- pack parameters (PyTorch gate order along rows is i, f, g, o) ---
    def pack_cols(w_t):        # w_t: (d, 4H) -> (d, G), gate columns permuted/blocked
        d = w_t.shape[0]
        out = jnp.zeros((d, G), jnp.float32)
        for k, g in enumerate(perm):
            out = out.at[:, k * GW:k * GW + H].set(w_t[:, g * H:(g + 1) * H])
        return out

    wih0 = pack_cols(jnp.asarray(layer_params[0][0], jnp.float32).T)   # (In, G), layer 0
    wihh = jnp.zeros((L, HW, G), jnp.float32)                          # layers > 0 (idx 0 unused)
    whh = jnp.zeros((L, HW, G), jnp.float32)                           # rows [H:HW) stay zero
    bias = jnp.zeros((L, 1, G), jnp.float32)                           # b_ih + b_hh, packed
    for l, (w_ih_l, w_hh_l, b_ih_l, b_hh_l) in enumerate(layer_params):
        whh = whh.at[l, :H, :].set(pack_cols(jnp.asarray(w_hh_l, jnp.float32).T))
        b = jnp.asarray(b_ih_l, jnp.float32) + jnp.asarray(b_hh_l, jnp.float32)
        for k, g in enumerate(perm):
            bias = bias.at[l, 0, k * GW:k * GW + H].set(b[g * H:(g + 1) * H])
        if l > 0:
            wihh = wihh.at[l, :H, :].set(pack_cols(jnp.asarray(w_ih_l, jnp.float32).T))

    wih0 = wih0.astype(matmul_dtype)
    wihh = wihh.astype(matmul_dtype)
    whh = whh.astype(recurrent_dtype)        # bf16 by default: single-pass MXU on serial path

    # time-major, batch padded to BP sublanes, flattened to 2-D rows: row = t*BP + b
    x_tm = jnp.transpose(x, (1, 0, 2))                       # (T, B, In)
    x_tm = jnp.pad(x_tm, ((0, 0), (0, BP - B), (0, 0)))      # (T, BP, In)
    x2d = x_tm.reshape(T * BP, In)

    ln_w2 = jnp.asarray(ln_w, jnp.float32).reshape(1, H)
    ln_b2 = jnp.asarray(ln_b, jnp.float32).reshape(1, H)

    # --- VMEM budget: derive from the actual part (v7x 64 MiB/TC vs v5e/v6e 128 MiB) ---
    mm_b = jnp.dtype(matmul_dtype).itemsize
    rec_b = jnp.dtype(recurrent_dtype).itemsize
    block_bytes = (2 * (T * BP * In * 4                      # x block (double-buffered)
                        + In * G * mm_b + HW * G * (mm_b + rec_b)   # weight blocks
                        + G * 4 + 2 * H * 4)                 # bias + layernorm params
                   + T * BP * (G + HW) * 4                   # gx + seq scratch
                   + 2 * B * H * 4)
    try:
        vmem_cap = pltpu.get_tpu_info().vmem_capacity_bytes
    except Exception:
        vmem_cap = 64 * 2 ** 20                              # conservative: v7x per-TC VMEM
    vmem_limit = int(min(0.9 * vmem_cap, max(4 * block_bytes, 32 * 2 ** 20)))

    unroll = min(T, 8)         # bounded unroll: overlap without blowing past 64 vregs

    def kernel(x_ref, wih0_ref, wihh_ref, whh_ref, b_ref, lnw_ref, lnb_ref,
               out_ref, gx_ref, seq_ref):
        layer = pl.program_id(0)
        last_layer = pl.num_programs(0) - 1
        bias_v = b_ref[0]                                    # (1, G) f32

        # ---- hoisted input projection: ONE big MXU matmul per layer (off the serial chain) ----
        @pl.when(layer == 0)
        def _():
            gx_ref[...] = jnp.dot(x_ref[...].astype(wih0_ref.dtype), wih0_ref[...],
                                  preferred_element_type=jnp.float32) + bias_v

        @pl.when(layer > 0)
        def _():
            gx_ref[...] = jnp.dot(seq_ref[...].astype(wihh_ref.dtype), wihh_ref[0],
                                  preferred_element_type=jnp.float32) + bias_v

        w_hh = whh_ref[0]                                    # (HW, G), recurrent_dtype
        store_seq = layer < last_layer                       # last layer's sequence is unused
        if compact:                                          # hoisted (JAX doesn't CSE iota)
            g_mask = lax.broadcasted_iota(jnp.int32, (BP, G), 1) >= 3 * H

        # ---- recurrence: h/c vreg-resident; only the small h @ W_hh dot on the serial path ----
        def step(t, carry):
            h, c = carry
            r0 = pl.multiple_of(t * BP, 8)                   # 8-aligned sublane offset
            gates = gx_ref[pl.ds(r0, BP), :] + jnp.dot(
                h.astype(w_hh.dtype), w_hh, preferred_element_type=jnp.float32)
            if compact:
                # Packed gate blocks over 4H lanes: [f | i | o | g]; c/h live in lanes [0:H).
                # One sigmoid + one tanh on the whole vreg, iota-select for the g block.
                act = jnp.where(g_mask, jnp.tanh(gates), jax.nn.sigmoid(gates))
                # XLU rolls bring i (block 1), o (block 2), g (block 3) to block 0.  o uses the
                # direction-agnostic half rotation; if the rotation convention is reversed the
                # other two rolls swap i<->g, which leaves the i*g product unchanged.
                a_ig1 = pltpu.roll(act, 3 * H, axis=1)       # i (or g)
                a_o = pltpu.roll(act, 2 * H, axis=1)         # o
                a_ig2 = pltpu.roll(act, 1 * H, axis=1)       # g (or i)
                c = act * c + a_ig1 * a_ig2                  # f*c + i*g   (valid in lanes [0:H))
                h = a_o * jnp.tanh(c)                        # lanes [H:4H) hold bounded garbage
                                                             # masked by the zero weight rows
            else:
                i_g = jax.nn.sigmoid(gates[:, 0 * GW:1 * GW])    # lane-aligned gate blocks
                f_g = jax.nn.sigmoid(gates[:, 1 * GW:2 * GW])
                g_g = jnp.tanh(gates[:, 2 * GW:3 * GW])
                o_g = jax.nn.sigmoid(gates[:, 3 * GW:4 * GW])
                c = f_g * c + i_g * g_g
                h = o_g * jnp.tanh(c)

            @pl.when(store_seq)
            def _():
                seq_ref[pl.ds(r0, BP), :] = h                # input rows for the next layer
            return (h, c)

        init = (jnp.zeros((BP, HW), jnp.float32), jnp.zeros((BP, HW), jnp.float32))
        h_last, _ = lax.fori_loop(0, T, step, init, unroll=unroll)

        # ---- last layer: LayerNorm(h_T) == LayerNorm(out)[:, -1, :] ----
        # NOTE: out_ref's block index is constant across the (arbitrary) layer axis, so the
        # same VMEM block is revisited every grid step and only flushed once at the end;
        # writing it solely on the final layer is therefore safe.  Do not change the out_specs
        # index_map without revisiting this.
        @pl.when(layer == last_layer)
        def _():
            h = h_last[:B, :H]
            mean = jnp.mean(h, axis=1, keepdims=True)
            cen = h - mean
            var = jnp.mean(cen * cen, axis=1, keepdims=True)
            out_ref[...] = cen * lax.rsqrt(var + 1e-5) * lnw_ref[...] + lnb_ref[...]

    out = pl.pallas_call(
        kernel,
        out_shape=jax.ShapeDtypeStruct((B, H), jnp.float32),
        grid_spec=pltpu.PrefetchScalarGridSpec(
            num_scalar_prefetch=0,
            grid=(L,),
            in_specs=[
                pl.BlockSpec((T * BP, In), lambda l: (0, 0)),      # x rows (fetched once)
                pl.BlockSpec((In, G), lambda l: (0, 0)),           # W_ih layer 0
                pl.BlockSpec((1, HW, G), lambda l: (l, 0, 0)),     # W_ih layers > 0
                pl.BlockSpec((1, HW, G), lambda l: (l, 0, 0)),     # W_hh
                pl.BlockSpec((1, 1, G), lambda l: (l, 0, 0)),      # bias
                pl.BlockSpec((1, H), lambda l: (0, 0)),            # ln weight
                pl.BlockSpec((1, H), lambda l: (0, 0)),            # ln bias
            ],
            out_specs=pl.BlockSpec((B, H), lambda l: (0, 0)),
            scratch_shapes=[
                pltpu.VMEM((T * BP, G), jnp.float32),    # hoisted gate pre-activations
                pltpu.VMEM((T * BP, HW), jnp.float32),   # carried layer-output sequence
            ],
        ),
        compiler_params=pltpu.CompilerParams(
            dimension_semantics=("arbitrary",),
            vmem_limit_bytes=vmem_limit),
    )(x2d, wih0, wihh, whh, bias, ln_w2, ln_b2)
    return out


def lstm_reference(x, layer_params, ln_w, ln_b):
    """Pure-JAX reference matching torch.nn.LSTM(batch_first) + LayerNorm + [:, -1, :]."""
    B, T, _ = x.shape
    H = layer_params[0][1].shape[1]
    seq = x
    for (w_ih, w_hh, b_ih, b_hh) in layer_params:
        h = jnp.zeros((B, H), x.dtype)
        c = jnp.zeros((B, H), x.dtype)
        outs = []
        for t in range(T):
            g = (jnp.dot(seq[:, t, :], w_ih.T, precision=lax.Precision.HIGHEST)
                 + jnp.dot(h, w_hh.T, precision=lax.Precision.HIGHEST)
                 + b_ih + b_hh)
            i = jax.nn.sigmoid(g[:, 0 * H:1 * H])
            f = jax.nn.sigmoid(g[:, 1 * H:2 * H])
            gg = jnp.tanh(g[:, 2 * H:3 * H])
            o = jax.nn.sigmoid(g[:, 3 * H:4 * H])
            c = f * c + i * gg
            h = o * jnp.tanh(c)
            outs.append(h)
        seq = jnp.stack(outs, axis=1)
    last = seq[:, -1, :]
    mean = jnp.mean(last, axis=-1, keepdims=True)
    var = jnp.mean((last - mean) ** 2, axis=-1, keepdims=True)
    return (last - mean) / jnp.sqrt(var + 1e-5) * ln_w + ln_b


if __name__ == "__main__":
    B, T, INPUT_SIZE, HIDDEN_SIZE, NUM_LAYERS = 2, 8, 16, 32, 2

    key = jax.random.PRNGKey(0)
    k = float(1.0 / (HIDDEN_SIZE ** 0.5))     # PyTorch nn.LSTM default init range

    layer_params = []
    for l in range(NUM_LAYERS):
        d_in = INPUT_SIZE if l == 0 else HIDDEN_SIZE
        key, k1, k2, k3, k4 = jax.random.split(key, 5)
        w_ih = jax.random.uniform(k1, (4 * HIDDEN_SIZE, d_in), jnp.float32, -k, k)
        w_hh = jax.random.uniform(k2, (4 * HIDDEN_SIZE, HIDDEN_SIZE), jnp.float32, -k, k)
        b_ih = jax.random.uniform(k3, (4 * HIDDEN_SIZE,), jnp.float32, -k, k)
        b_hh = jax.random.uniform(k4, (4 * HIDDEN_SIZE,), jnp.float32, -k, k)
        layer_params.append((w_ih, w_hh, b_ih, b_hh))
    ln_w = jnp.ones((HIDDEN_SIZE,), jnp.float32)    # nn.LayerNorm default init
    ln_b = jnp.zeros((HIDDEN_SIZE,), jnp.float32)

    key, kx = jax.random.split(key)
    x = jax.random.normal(kx, (B, T, INPUT_SIZE), jnp.float32)

    ref = lstm_reference(x, layer_params, ln_w, ln_b)

    # 1) Exact f32 path, compact gate layout (H=32 < 128; B=2 exercises batch padding):
    #    tight tolerance so gate-permutation / roll / padding bugs cannot hide.
    out = jax.block_until_ready(
        lstm_pallas(x, layer_params, ln_w, ln_b,
                    matmul_dtype=jnp.float32, recurrent_dtype=jnp.float32))
    assert out.shape == (B, HIDDEN_SIZE)
    err = float(jnp.max(jnp.abs(out - ref)))
    assert err < 1e-3, f"compact f32 max abs diff {err}"

    # 2) Exact f32 path, forced 128-lane gate-blocked layout (the H >= 128 code path).
    out_blk = jax.block_until_ready(
        lstm_pallas(x, layer_params, ln_w, ln_b,
                    matmul_dtype=jnp.float32, recurrent_dtype=jnp.float32,
                    force_blocked=True))
    err = float(jnp.max(jnp.abs(out_blk - ref)))
    assert err < 1e-3, f"blocked f32 max abs diff {err}"

    # 3) Default fast path: bf16 recurrent-dot operands (f32 accumulation), f32 projections.
    out_fast = jax.block_until_ready(lstm_pallas(x, layer_params, ln_w, ln_b))
    err = float(jnp.max(jnp.abs(out_fast - ref)))
    assert err < 1e-1, f"default (bf16 recurrent) max abs diff {err}"

    # 4) Full bf16 MXU path (all matmul operands bf16, f32 accumulation).
    out_bf16 = jax.block_until_ready(
        lstm_pallas(x, layer_params, ln_w, ln_b, matmul_dtype=jnp.bfloat16))
    err = float(jnp.max(jnp.abs(out_bf16 - ref)))
    assert err < 1e-1, f"bf16 max abs diff {err}"

    print("KERNEL_OK")
</pallas_src>

<mosaic_0001>
module attributes {stable_mosaic.version = 11 : i64} {
  func.func @kernel(%arg0: i32, %arg1: memref<64x16xf32, #tpu.memory_space<vmem>>, %arg2: memref<16x128xf32, #tpu.memory_space<vmem>>, %arg3: memref<1x128x128xf32, #tpu.memory_space<vmem>>, %arg4: memref<1x128x128xf32, #tpu.memory_space<vmem>>, %arg5: memref<1x1x128xf32, #tpu.memory_space<vmem>>, %arg6: memref<1x32xf32, #tpu.memory_space<vmem>>, %arg7: memref<1x32xf32, #tpu.memory_space<vmem>>, %arg8: memref<2x32xf32, #tpu.memory_space<vmem>>, %arg9: memref<64x128xf32, #tpu.memory_space<vmem>>, %arg10: memref<64x128xf32, #tpu.memory_space<vmem>>) attributes {dimension_semantics = [#tpu.dimension_semantics<arbitrary>], iteration_bounds = array<i64: 2>, scalar_prefetch = 0 : i64, scratch_operands = 2 : i64, tpu.core_type = #tpu.core_type<tc>, window_params = [{pipeline_mode = #tpu.pipeline_mode<synchronous>, transform_indices = @transform_0, window_bounds = array<i64: 64, 16>}, {pipeline_mode = #tpu.pipeline_mode<synchronous>, transform_indices = @transform_1, window_bounds = array<i64: 16, 128>}, {transform_indices = @transform_2, window_bounds = array<i64: 1, 128, 128>}, {transform_indices = @transform_3, window_bounds = array<i64: 1, 128, 128>}, {transform_indices = @transform_4, window_bounds = array<i64: 1, 1, 128>}, {pipeline_mode = #tpu.pipeline_mode<synchronous>, transform_indices = @transform_5, window_bounds = array<i64: 1, 32>}, {pipeline_mode = #tpu.pipeline_mode<synchronous>, transform_indices = @transform_6, window_bounds = array<i64: 1, 32>}, {pipeline_mode = #tpu.pipeline_mode<synchronous>, transform_indices = @transform_7, window_bounds = array<i64: 2, 32>}]} {
    %c0 = arith.constant 0 : index
    %c0_0 = arith.constant 0 : index
    %c0_1 = arith.constant 0 : index
    %0 = vector.load %arg5[%c0, %c0_0, %c0_1] : memref<1x1x128xf32, #tpu.memory_space<vmem>>, vector<1x1x128xf32>
    %1 = vector.shape_cast %0 : vector<1x1x128xf32> to vector<1x128xf32>
    %c0_i32 = arith.constant 0 : i32
    %2 = arith.cmpi eq, %arg0, %c0_i32 : i32
    %3 = arith.extui %2 : i1 to i32
    %c0_i32_2 = arith.constant 0 : i32
    %4 = arith.cmpi ne, %3, %c0_i32_2 : i32
    scf.if %4 {
      %c0_75 = arith.constant 0 : index
      %c0_76 = arith.constant 0 : index
      %203 = vector.load %arg1[%c0_75, %c0_76] : memref<64x16xf32, #tpu.memory_space<vmem>>, vector<64x16xf32>
      %c0_77 = arith.constant 0 : index
      %c0_78 = arith.constant 0 : index
      %204 = vector.load %arg2[%c0_77, %c0_78] : memref<16x128xf32, #tpu.memory_space<vmem>>, vector<16x128xf32>
      %cst_79 = arith.constant dense<0.000000e+00> : vector<64x128xf32>
      %205 = tpu.matmul %203, %204, %cst_79 {dimension_numbers = #tpu.dot_dimension_numbers<[1], [0], [0], [1], [0, 0, 1, 1], [], []>} : vector<64x16xf32>, vector<16x128xf32>, vector<64x128xf32> -> vector<64x128xf32>
      %206 = vector.broadcast %1 : vector<1x128xf32> to vector<64x128xf32>
      %207 = arith.addf %205, %206 : vector<64x128xf32>
      %c0_80 = arith.constant 0 : index
      %c0_81 = arith.constant 0 : index
      %208 = vector.load %arg9[%c0_80, %c0_81] : memref<64x128xf32, #tpu.memory_space<vmem>>, vector<64x128xf32>
      tpu.vector_store %arg9[%c0_80, %c0_81], %207 {strides = array<i32>} : memref<64x128xf32, #tpu.memory_space<vmem>>, vector<64x128xf32>,
    } else {
    }
    %c0_i32_3 = arith.constant 0 : i32
    %5 = arith.cmpi sgt, %arg0, %c0_i32_3 : i32
    %6 = arith.extui %5 : i1 to i32
    %c0_i32_4 = arith.constant 0 : i32
    %7 = arith.cmpi ne, %6, %c0_i32_4 : i32
    scf.if %7 {
      %c0_75 = arith.constant 0 : index
      %c0_76 = arith.constant 0 : index
      %203 = vector.load %arg10[%c0_75, %c0_76] : memref<64x128xf32, #tpu.memory_space<vmem>>, vector<64x128xf32>
      %c0_77 = arith.constant 0 : index
      %c0_78 = arith.constant 0 : index
      %c0_79 = arith.constant 0 : index
      %204 = vector.load %arg3[%c0_77, %c0_78, %c0_79] : memref<1x128x128xf32, #tpu.memory_space<vmem>>, vector<1x128x128xf32>
      %205 = vector.shape_cast %204 : vector<1x128x128xf32> to vector<128x128xf32>
      %cst_80 = arith.constant dense<0.000000e+00> : vector<64x128xf32>
      %206 = tpu.matmul %203, %205, %cst_80 {dimension_numbers = #tpu.dot_dimension_numbers<[1], [0], [0], [1], [0, 0, 1, 1], [], []>} : vector<64x128xf32>, vector<128x128xf32>, vector<64x128xf32> -> vector<64x128xf32>
      %207 = vector.broadcast %1 : vector<1x128xf32> to vector<64x128xf32>
      %208 = arith.addf %206, %207 : vector<64x128xf32>
      %c0_81 = arith.constant 0 : index
      %c0_82 = arith.constant 0 : index
      %209 = vector.load %arg9[%c0_81, %c0_82] : memref<64x128xf32, #tpu.memory_space<vmem>>, vector<64x128xf32>
      tpu.vector_store %arg9[%c0_81, %c0_82], %208 {strides = array<i32>} : memref<64x128xf32, #tpu.memory_space<vmem>>, vector<64x128xf32>,
    } else {
    }
    %c0_5 = arith.constant 0 : index
    %c0_6 = arith.constant 0 : index
    %c0_7 = arith.constant 0 : index
    %8 = vector.load %arg4[%c0_5, %c0_6, %c0_7] : memref<1x128x128xf32, #tpu.memory_space<vmem>>, vector<1x128x128xf32>
    %9 = vector.shape_cast %8 : vector<1x128x128xf32> to vector<128x128xf32>
    %c1_i32 = arith.constant 1 : i32
    %10 = arith.cmpi slt, %arg0, %c1_i32 : i32
    %11 = tpu.iota {dimensions = array<i32: 1>} : vector<8x128xi32>
    %c96_i32 = arith.constant 96 : i32
    %12 = vector.broadcast %c96_i32 : i32 to vector<8x128xi32>
    %13 = arith.cmpi sge, %11, %12 : vector<8x128xi32>
    %cst = arith.constant 0.000000e+00 : f32
    %14 = vector.broadcast %cst : f32 to vector<8x128xf32>
    %cst_8 = arith.constant 0.000000e+00 : f32
    %15 = vector.broadcast %cst_8 : f32 to vector<8x128xf32>
    %c0_i32_9 = arith.constant 0 : i32
    %c8_i32 = arith.constant 8 : i32
    %16 = arith.muli %c0_i32_9, %c8_i32 : i32
    %17 = tpu.assume_multiple %16, 8 : i32
    %18 = arith.index_cast %17 : i32 to index
    %c0_10 = arith.constant 0 : index
    %19 = vector.load %arg9[%18, %c0_10] : memref<64x128xf32, #tpu.memory_space<vmem>>, vector<8x128xf32>
    %cst_11 = arith.constant dense<0.000000e+00> : vector<8x128xf32>
    %20 = tpu.matmul %14, %9, %cst_11 {dimension_numbers = #tpu.dot_dimension_numbers<[1], [0], [0], [1], [0, 0, 1, 1], [], []>} : vector<8x128xf32>, vector<128x128xf32>, vector<8x128xf32> -> vector<8x128xf32>
    %21 = arith.addf %19, %20 : vector<8x128xf32>
    %22 = math.tanh %21 : vector<8x128xf32>
    %23 = arith.negf %21 : vector<8x128xf32>
    %24 = math.exp %23 : vector<8x128xf32>
    %cst_12 = arith.constant 1.000000e+00 : f32
    %25 = vector.broadcast %cst_12 : f32 to vector<8x128xf32>
    %26 = arith.addf %25, %24 : vector<8x128xf32>
    %27 = arith.divf %25, %26 : vector<8x128xf32>
    %28 = arith.select %13, %22, %27 : vector<8x128xi1>, vector<8x128xf32>
    %c96_i32_13 = arith.constant 96 : i32
    %29 = tpu.dynamic_rotate %28 by %c96_i32_13 dim 1 : vector<8x128xf32>, i32 -> vector<8x128xf32>
    %c64_i32 = arith.constant 64 : i32
    %30 = tpu.dynamic_rotate %28 by %c64_i32 dim 1 : vector<8x128xf32>, i32 -> vector<8x128xf32>
    %c32_i32 = arith.constant 32 : i32
    %31 = tpu.dynamic_rotate %28 by %c32_i32 dim 1 : vector<8x128xf32>, i32 -> vector<8x128xf32>
    %32 = arith.mulf %28, %15 : vector<8x128xf32>
    %33 = arith.mulf %29, %31 : vector<8x128xf32>
    %34 = arith.addf %32, %33 : vector<8x128xf32>
    %35 = math.tanh %34 : vector<8x128xf32>
    %36 = arith.mulf %30, %35 : vector<8x128xf32>
    %37 = arith.extui %10 : i1 to i32
    %c0_i32_14 = arith.constant 0 : i32
    %38 = arith.cmpi ne, %37, %c0_i32_14 : i32
    scf.if %38 {
      %203 = arith.index_cast %17 : i32 to index
      %c0_75 = arith.constant 0 : index
      %204 = vector.load %arg10[%203, %c0_75] : memref<64x128xf32, #tpu.memory_space<vmem>>, vector<8x128xf32>
      tpu.vector_store %arg10[%203, %c0_75], %36 {strides = array<i32>} : memref<64x128xf32, #tpu.memory_space<vmem>>, vector<8x128xf32>,
    } else {
    }
    %c1_i32_15 = arith.constant 1 : i32
    %c8_i32_16 = arith.constant 8 : i32
    %39 = arith.muli %c1_i32_15, %c8_i32_16 : i32
    %40 = tpu.assume_multiple %39, 8 : i32
    %41 = arith.index_cast %40 : i32 to index
    %c0_17 = arith.constant 0 : index
    %42 = vector.load %arg9[%41, %c0_17] : memref<64x128xf32, #tpu.memory_space<vmem>>, vector<8x128xf32>
    %cst_18 = arith.constant dense<0.000000e+00> : vector<8x128xf32>
    %43 = tpu.matmul %36, %9, %cst_18 {dimension_numbers = #tpu.dot_dimension_numbers<[1], [0], [0], [1], [0, 0, 1, 1], [], []>} : vector<8x128xf32>, vector<128x128xf32>, vector<8x128xf32> -> vector<8x128xf32>
    %44 = arith.addf %42, %43 : vector<8x128xf32>
    %45 = math.tanh %44 : vector<8x128xf32>
    %46 = arith.negf %44 : vector<8x128xf32>
    %47 = math.exp %46 : vector<8x128xf32>
    %cst_19 = arith.constant 1.000000e+00 : f32
    %48 = vector.broadcast %cst_19 : f32 to vector<8x128xf32>
    %49 = arith.addf %48, %47 : vector<8x128xf32>
    %50 = arith.divf %48, %49 : vector<8x128xf32>
    %51 = arith.select %13, %45, %50 : vector<8x128xi1>, vector<8x128xf32>
    %c96_i32_20 = arith.constant 96 : i32
    %52 = tpu.dynamic_rotate %51 by %c96_i32_20 dim 1 : vector<8x128xf32>, i32 -> vector<8x128xf32>
    %c64_i32_21 = arith.constant 64 : i32
    %53 = tpu.dynamic_rotate %51 by %c64_i32_21 dim 1 : vector<8x128xf32>, i32 -> vector<8x128xf32>
    %c32_i32_22 = arith.constant 32 : i32
    %54 = tpu.dynamic_rotate %51 by %c32_i32_22 dim 1 : vector<8x128xf32>, i32 -> vector<8x128xf32>
    %55 = arith.mulf %51, %34 : vector<8x128xf32>
    %56 = arith.mulf %52, %54 : vector<8x128xf32>
    %57 = arith.addf %55, %56 : vector<8x128xf32>
    %58 = math.tanh %57 : vector<8x128xf32>
    %59 = arith.mulf %53, %58 : vector<8x128xf32>
    %60 = arith.extui %10 : i1 to i32
    %c0_i32_23 = arith.constant 0 : i32
    %61 = arith.cmpi ne, %60, %c0_i32_23 : i32
    scf.if %61 {
      %203 = arith.index_cast %40 : i32 to index
      %c0_75 = arith.constant 0 : index
      %204 = vector.load %arg10[%203, %c0_75] : memref<64x128xf32, #tpu.memory_space<vmem>>, vector<8x128xf32>
      tpu.vector_store %arg10[%203, %c0_75], %59 {strides = array<i32>} : memref<64x128xf32, #tpu.memory_space<vmem>>, vector<8x128xf32>,
    } else {
    }
    %c2_i32 = arith.constant 2 : i32
    %c8_i32_24 = arith.constant 8 : i32
    %62 = arith.muli %c2_i32, %c8_i32_24 : i32
    %63 = tpu.assume_multiple %62, 8 : i32
    %64 = arith.index_cast %63 : i32 to index
    %c0_25 = arith.constant 0 : index
    %65 = vector.load %arg9[%64, %c0_25] : memref<64x128xf32, #tpu.memory_space<vmem>>, vector<8x128xf32>
    %cst_26 = arith.constant dense<0.000000e+00> : vector<8x128xf32>
    %66 = tpu.matmul %59, %9, %cst_26 {dimension_numbers = #tpu.dot_dimension_numbers<[1], [0], [0], [1], [0, 0, 1, 1], [], []>} : vector<8x128xf32>, vector<128x128xf32>, vector<8x128xf32> -> vector<8x128xf32>
    %67 = arith.addf %65, %66 : vector<8x128xf32>
    %68 = math.tanh %67 : vector<8x128xf32>
    %69 = arith.negf %67 : vector<8x128xf32>
    %70 = math.exp %69 : vector<8x128xf32>
    %cst_27 = arith.constant 1.000000e+00 : f32
    %71 = vector.broadcast %cst_27 : f32 to vector<8x128xf32>
    %72 = arith.addf %71, %70 : vector<8x128xf32>
    %73 = arith.divf %71, %72 : vector<8x128xf32>
    %74 = arith.select %13, %68, %73 : vector<8x128xi1>, vector<8x128xf32>
    %c96_i32_28 = arith.constant 96 : i32
    %75 = tpu.dynamic_rotate %74 by %c96_i32_28 dim 1 : vector<8x128xf32>, i32 -> vector<8x128xf32>
    %c64_i32_29 = arith.constant 64 : i32
    %76 = tpu.dynamic_rotate %74 by %c64_i32_29 dim 1 : vector<8x128xf32>, i32 -> vector<8x128xf32>
    %c32_i32_30 = arith.constant 32 : i32
    %77 = tpu.dynamic_rotate %74 by %c32_i32_30 dim 1 : vector<8x128xf32>, i32 -> vector<8x128xf32>
    %78 = arith.mulf %74, %57 : vector<8x128xf32>
    %79 = arith.mulf %75, %77 : vector<8x128xf32>
    %80 = arith.addf %78, %79 : vector<8x128xf32>
    %81 = math.tanh %80 : vector<8x128xf32>
    %82 = arith.mulf %76, %81 : vector<8x128xf32>
    %83 = arith.extui %10 : i1 to i32
    %c0_i32_31 = arith.constant 0 : i32
    %84 = arith.cmpi ne, %83, %c0_i32_31 : i32
    scf.if %84 {
      %203 = arith.index_cast %63 : i32 to index
      %c0_75 = arith.constant 0 : index
      %204 = vector.load %arg10[%203, %c0_75] : memref<64x128xf32, #tpu.memory_space<vmem>>, vector<8x128xf32>
      tpu.vector_store %arg10[%203, %c0_75], %82 {strides = array<i32>} : memref<64x128xf32, #tpu.memory_space<vmem>>, vector<8x128xf32>,
    } else {
    }
    %c3_i32 = arith.constant 3 : i32
    %c8_i32_32 = arith.constant 8 : i32
    %85 = arith.muli %c3_i32, %c8_i32_32 : i32
    %86 = tpu.assume_multiple %85, 8 : i32
    %87 = arith.index_cast %86 : i32 to index
    %c0_33 = arith.constant 0 : index
    %88 = vector.load %arg9[%87, %c0_33] : memref<64x128xf32, #tpu.memory_space<vmem>>, vector<8x128xf32>
    %cst_34 = arith.constant dense<0.000000e+00> : vector<8x128xf32>
    %89 = tpu.matmul %82, %9, %cst_34 {dimension_numbers = #tpu.dot_dimension_numbers<[1], [0], [0], [1], [0, 0, 1, 1], [], []>} : vector<8x128xf32>, vector<128x128xf32>, vector<8x128xf32> -> vector<8x128xf32>
    %90 = arith.addf %88, %89 : vector<8x128xf32>
    %91 = math.tanh %90 : vector<8x128xf32>
    %92 = arith.negf %90 : vector<8x128xf32>
    %93 = math.exp %92 : vector<8x128xf32>
    %cst_35 = arith.constant 1.000000e+00 : f32
    %94 = vector.broadcast %cst_35 : f32 to vector<8x128xf32>
    %95 = arith.addf %94, %93 : vector<8x128xf32>
    %96 = arith.divf %94, %95 : vector<8x128xf32>
    %97 = arith.select %13, %91, %96 : vector<8x128xi1>, vector<8x128xf32>
    %c96_i32_36 = arith.constant 96 : i32
    %98 = tpu.dynamic_rotate %97 by %c96_i32_36 dim 1 : vector<8x128xf32>, i32 -> vector<8x128xf32>
    %c64_i32_37 = arith.constant 64 : i32
    %99 = tpu.dynamic_rotate %97 by %c64_i32_37 dim 1 : vector<8x128xf32>, i32 -> vector<8x128xf32>
    %c32_i32_38 = arith.constant 32 : i32
    %100 = tpu.dynamic_rotate %97 by %c32_i32_38 dim 1 : vector<8x128xf32>, i32 -> vector<8x128xf32>
    %101 = arith.mulf %97, %80 : vector<8x128xf32>
    %102 = arith.mulf %98, %100 : vector<8x128xf32>
    %103 = arith.addf %101, %102 : vector<8x128xf32>
    %104 = math.tanh %103 : vector<8x128xf32>
    %105 = arith.mulf %99, %104 : vector<8x128xf32>
    %106 = arith.extui %10 : i1 to i32
    %c0_i32_39 = arith.constant 0 : i32
    %107 = arith.cmpi ne, %106, %c0_i32_39 : i32
    scf.if %107 {
      %203 = arith.index_cast %86 : i32 to index
      %c0_75 = arith.constant 0 : index
      %204 = vector.load %arg10[%203, %c0_75] : memref<64x128xf32, #tpu.memory_space<vmem>>, vector<8x128xf32>
      tpu.vector_store %arg10[%203, %c0_75], %105 {strides = array<i32>} : memref<64x128xf32, #tpu.memory_space<vmem>>, vector<8x128xf32>,
    } else {
    }
    %c4_i32 = arith.constant 4 : i32
    %c8_i32_40 = arith.constant 8 : i32
    %108 = arith.muli %c4_i32, %c8_i32_40 : i32
    %109 = tpu.assume_multiple %108, 8 : i32
    %110 = arith.index_cast %109 : i32 to index
    %c0_41 = arith.constant 0 : index
    %111 = vector.load %arg9[%110, %c0_41] : memref<64x128xf32, #tpu.memory_space<vmem>>, vector<8x128xf32>
    %cst_42 = arith.constant dense<0.000000e+00> : vector<8x128xf32>
    %112 = tpu.matmul %105, %9, %cst_42 {dimension_numbers = #tpu.dot_dimension_numbers<[1], [0], [0], [1], [0, 0, 1, 1], [], []>} : vector<8x128xf32>, vector<128x128xf32>, vector<8x128xf32> -> vector<8x128xf32>
    %113 = arith.addf %111, %112 : vector<8x128xf32>
    %114 = math.tanh %113 : vector<8x128xf32>
    %115 = arith.negf %113 : vector<8x128xf32>
    %116 = math.exp %115 : vector<8x128xf32>
    %cst_43 = arith.constant 1.000000e+00 : f32
    %117 = vector.broadcast %cst_43 : f32 to vector<8x128xf32>
    %118 = arith.addf %117, %116 : vector<8x128xf32>
    %119 = arith.divf %117, %118 : vector<8x128xf32>
    %120 = arith.select %13, %114, %119 : vector<8x128xi1>, vector<8x128xf32>
    %c96_i32_44 = arith.constant 96 : i32
    %121 = tpu.dynamic_rotate %120 by %c96_i32_44 dim 1 : vector<8x128xf32>, i32 -> vector<8x128xf32>
    %c64_i32_45 = arith.constant 64 : i32
    %122 = tpu.dynamic_rotate %120 by %c64_i32_45 dim 1 : vector<8x128xf32>, i32 -> vector<8x128xf32>
    %c32_i32_46 = arith.constant 32 : i32
    %123 = tpu.dynamic_rotate %120 by %c32_i32_46 dim 1 : vector<8x128xf32>, i32 -> vector<8x128xf32>
    %124 = arith.mulf %120, %103 : vector<8x128xf32>
    %125 = arith.mulf %121, %123 : vector<8x128xf32>
    %126 = arith.addf %124, %125 : vector<8x128xf32>
    %127 = math.tanh %126 : vector<8x128xf32>
    %128 = arith.mulf %122, %127 : vector<8x128xf32>
    %129 = arith.extui %10 : i1 to i32
    %c0_i32_47 = arith.constant 0 : i32
    %130 = arith.cmpi ne, %129, %c0_i32_47 : i32
    scf.if %130 {
      %203 = arith.index_cast %109 : i32 to index
      %c0_75 = arith.constant 0 : index
      %204 = vector.load %arg10[%203, %c0_75] : memref<64x128xf32, #tpu.memory_space<vmem>>, vector<8x128xf32>
      tpu.vector_store %arg10[%203, %c0_75], %128 {strides = array<i32>} : memref<64x128xf32, #tpu.memory_space<vmem>>, vector<8x128xf32>,
    } else {
    }
    %c5_i32 = arith.constant 5 : i32
    %c8_i32_48 = arith.constant 8 : i32
    %131 = arith.muli %c5_i32, %c8_i32_48 : i32
    %132 = tpu.assume_multiple %131, 8 : i32
    %133 = arith.index_cast %132 : i32 to index
    %c0_49 = arith.constant 0 : index
    %134 = vector.load %arg9[%133, %c0_49] : memref<64x128xf32, #tpu.memory_space<vmem>>, vector<8x128xf32>
    %cst_50 = arith.constant dense<0.000000e+00> : vector<8x128xf32>
    %135 = tpu.matmul %128, %9, %cst_50 {dimension_numbers = #tpu.dot_dimension_numbers<[1], [0], [0], [1], [0, 0, 1, 1], [], []>} : vector<8x128xf32>, vector<128x128xf32>, vector<8x128xf32> -> vector<8x128xf32>
    %136 = arith.addf %134, %135 : vector<8x128xf32>
    %137 = math.tanh %136 : vector<8x128xf32>
    %138 = arith.negf %136 : vector<8x128xf32>
    %139 = math.exp %138 : vector<8x128xf32>
    %cst_51 = arith.constant 1.000000e+00 : f32
    %140 = vector.broadcast %cst_51 : f32 to vector<8x128xf32>
    %141 = arith.addf %140, %139 : vector<8x128xf32>
    %142 = arith.divf %140, %141 : vector<8x128xf32>
    %143 = arith.select %13, %137, %142 : vector<8x128xi1>, vector<8x128xf32>
    %c96_i32_52 = arith.constant 96 : i32
    %144 = tpu.dynamic_rotate %143 by %c96_i32_52 dim 1 : vector<8x128xf32>, i32 -> vector<8x128xf32>
    %c64_i32_53 = arith.constant 64 : i32
    %145 = tpu.dynamic_rotate %143 by %c64_i32_53 dim 1 : vector<8x128xf32>, i32 -> vector<8x128xf32>
    %c32_i32_54 = arith.constant 32 : i32
    %146 = tpu.dynamic_rotate %143 by %c32_i32_54 dim 1 : vector<8x128xf32>, i32 -> vector<8x128xf32>
    %147 = arith.mulf %143, %126 : vector<8x128xf32>
    %148 = arith.mulf %144, %146 : vector<8x128xf32>
    %149 = arith.addf %147, %148 : vector<8x128xf32>
    %150 = math.tanh %149 : vector<8x128xf32>
    %151 = arith.mulf %145, %150 : vector<8x128xf32>
    %152 = arith.extui %10 : i1 to i32
    %c0_i32_55 = arith.constant 0 : i32
    %153 = arith.cmpi ne, %152, %c0_i32_55 : i32
    scf.if %153 {
      %203 = arith.index_cast %132 : i32 to index
      %c0_75 = arith.constant 0 : index
      %204 = vector.load %arg10[%203, %c0_75] : memref<64x128xf32, #tpu.memory_space<vmem>>, vector<8x128xf32>
      tpu.vector_store %arg10[%203, %c0_75], %151 {strides = array<i32>} : memref<64x128xf32, #tpu.memory_space<vmem>>, vector<8x128xf32>,
    } else {
    }
    %c6_i32 = arith.constant 6 : i32
    %c8_i32_56 = arith.constant 8 : i32
    %154 = arith.muli %c6_i32, %c8_i32_56 : i32
    %155 = tpu.assume_multiple %154, 8 : i32
    %156 = arith.index_cast %155 : i32 to index
    %c0_57 = arith.constant 0 : index
    %157 = vector.load %arg9[%156, %c0_57] : memref<64x128xf32, #tpu.memory_space<vmem>>, vector<8x128xf32>
    %cst_58 = arith.constant dense<0.000000e+00> : vector<8x128xf32>
    %158 = tpu.matmul %151, %9, %cst_58 {dimension_numbers = #tpu.dot_dimension_numbers<[1], [0], [0], [1], [0, 0, 1, 1], [], []>} : vector<8x128xf32>, vector<128x128xf32>, vector<8x128xf32> -> vector<8x128xf32>
    %159 = arith.addf %157, %158 : vector<8x128xf32>
    %160 = math.tanh %159 : vector<8x128xf32>
    %161 = arith.negf %159 : vector<8x128xf32>
    %162 = math.exp %161 : vector<8x128xf32>
    %cst_59 = arith.constant 1.000000e+00 : f32
    %163 = vector.broadcast %cst_59 : f32 to vector<8x128xf32>
    %164 = arith.addf %163, %162 : vector<8x128xf32>
    %165 = arith.divf %163, %164 : vector<8x128xf32>
    %166 = arith.select %13, %160, %165 : vector<8x128xi1>, vector<8x128xf32>
    %c96_i32_60 = arith.constant 96 : i32
    %167 = tpu.dynamic_rotate %166 by %c96_i32_60 dim 1 : vector<8x128xf32>, i32 -> vector<8x128xf32>
    %c64_i32_61 = arith.constant 64 : i32
    %168 = tpu.dynamic_rotate %166 by %c64_i32_61 dim 1 : vector<8x128xf32>, i32 -> vector<8x128xf32>
    %c32_i32_62 = arith.constant 32 : i32
    %169 = tpu.dynamic_rotate %166 by %c32_i32_62 dim 1 : vector<8x128xf32>, i32 -> vector<8x128xf32>
    %170 = arith.mulf %166, %149 : vector<8x128xf32>
    %171 = arith.mulf %167, %169 : vector<8x128xf32>
    %172 = arith.addf %170, %171 : vector<8x128xf32>
    %173 = math.tanh %172 : vector<8x128xf32>
    %174 = arith.mulf %168, %173 : vector<8x128xf32>
    %175 = arith.extui %10 : i1 to i32
    %c0_i32_63 = arith.constant 0 : i32
    %176 = arith.cmpi ne, %175, %c0_i32_63 : i32
    scf.if %176 {
      %203 = arith.index_cast %155 : i32 to index
      %c0_75 = arith.constant 0 : index
      %204 = vector.load %arg10[%203, %c0_75] : memref<64x128xf32, #tpu.memory_space<vmem>>, vector<8x128xf32>
      tpu.vector_store %arg10[%203, %c0_75], %174 {strides = array<i32>} : memref<64x128xf32, #tpu.memory_space<vmem>>, vector<8x128xf32>,
    } else {
    }
    %c7_i32 = arith.constant 7 : i32
    %c8_i32_64 = arith.constant 8 : i32
    %177 = arith.muli %c7_i32, %c8_i32_64 : i32
    %178 = tpu.assume_multiple %177, 8 : i32
    %179 = arith.index_cast %178 : i32 to index
    %c0_65 = arith.constant 0 : index
    %180 = vector.load %arg9[%179, %c0_65] : memref<64x128xf32, #tpu.memory_space<vmem>>, vector<8x128xf32>
    %cst_66 = arith.constant dense<0.000000e+00> : vector<8x128xf32>
    %181 = tpu.matmul %174, %9, %cst_66 {dimension_numbers = #tpu.dot_dimension_numbers<[1], [0], [0], [1], [0, 0, 1, 1], [], []>} : vector<8x128xf32>, vector<128x128xf32>, vector<8x128xf32> -> vector<8x128xf32>
    %182 = arith.addf %180, %181 : vector<8x128xf32>
    %183 = math.tanh %182 : vector<8x128xf32>
    %184 = arith.negf %182 : vector<8x128xf32>
    %185 = math.exp %184 : vector<8x128xf32>
    %cst_67 = arith.constant 1.000000e+00 : f32
    %186 = vector.broadcast %cst_67 : f32 to vector<8x128xf32>
    %187 = arith.addf %186, %185 : vector<8x128xf32>
    %188 = arith.divf %186, %187 : vector<8x128xf32>
    %189 = arith.select %13, %183, %188 : vector<8x128xi1>, vector<8x128xf32>
    %c96_i32_68 = arith.constant 96 : i32
    %190 = tpu.dynamic_rotate %189 by %c96_i32_68 dim 1 : vector<8x128xf32>, i32 -> vector<8x128xf32>
    %c64_i32_69 = arith.constant 64 : i32
    %191 = tpu.dynamic_rotate %189 by %c64_i32_69 dim 1 : vector<8x128xf32>, i32 -> vector<8x128xf32>
    %c32_i32_70 = arith.constant 32 : i32
    %192 = tpu.dynamic_rotate %189 by %c32_i32_70 dim 1 : vector<8x128xf32>, i32 -> vector<8x128xf32>
    %193 = arith.mulf %189, %172 : vector<8x128xf32>
    %194 = arith.mulf %190, %192 : vector<8x128xf32>
    %195 = arith.addf %193, %194 : vector<8x128xf32>
    %196 = math.tanh %195 : vector<8x128xf32>
    %197 = arith.mulf %191, %196 : vector<8x128xf32>
    %198 = arith.extui %10 : i1 to i32
    %c0_i32_71 = arith.constant 0 : i32
    %199 = arith.cmpi ne, %198, %c0_i32_71 : i32
    scf.if %199 {
      %203 = arith.index_cast %178 : i32 to index
      %c0_75 = arith.constant 0 : index
      %204 = vector.load %arg10[%203, %c0_75] : memref<64x128xf32, #tpu.memory_space<vmem>>, vector<8x128xf32>
      tpu.vector_store %arg10[%203, %c0_75], %197 {strides = array<i32>} : memref<64x128xf32, #tpu.memory_space<vmem>>, vector<8x128xf32>,
    } else {
    }
    %c8_i32_72 = arith.constant 8 : i32
    %c1_i32_73 = arith.constant 1 : i32
    %200 = arith.cmpi eq, %arg0, %c1_i32_73 : i32
    %201 = arith.extui %200 : i1 to i32
    %c0_i32_74 = arith.constant 0 : i32
    %202 = arith.cmpi ne, %201, %c0_i32_74 : i32
    scf.if %202 {
      %203 = vector.extract_strided_slice %197 {offsets = [0, 0], sizes = [2, 32], strides = [1, 1]} : vector<8x128xf32> to vector<2x32xf32>
      %cst_75 = arith.constant dense<0.000000e+00> : vector<2xf32>
      %204 = vector.multi_reduction <add>, %203, %cst_75 [1] : vector<2x32xf32> to vector<2xf32>
      %205 = vector.shape_cast %204 : vector<2xf32> to vector<2x1xf32>
      %cst_76 = arith.constant 3.200000e+01 : f32
      %206 = vector.broadcast %cst_76 : f32 to vector<2x1xf32>
      %207 = arith.divf %205, %206 : vector<2x1xf32>
      %208 = vector.broadcast %207 : vector<2x1xf32> to vector<2x32xf32>
      %209 = arith.subf %203, %208 : vector<2x32xf32>
      %210 = arith.mulf %209, %209 : vector<2x32xf32>
      %cst_77 = arith.constant dense<0.000000e+00> : vector<2xf32>
      %211 = vector.multi_reduction <add>, %210, %cst_77 [1] : vector<2x32xf32> to vector<2xf32>
      %212 = vector.shape_cast %211 : vector<2xf32> to vector<2x1xf32>
      %cst_78 = arith.constant 3.200000e+01 : f32
      %213 = vector.broadcast %cst_78 : f32 to vector<2x1xf32>
      %214 = arith.divf %212, %213 : vector<2x1xf32>
      %cst_79 = arith.constant 9.99999974E-6 : f32
      %215 = vector.broadcast %cst_79 : f32 to vector<2x1xf32>
      %216 = arith.addf %214, %215 : vector<2x1xf32>
      %217 = math.rsqrt %216 : vector<2x1xf32>
      %218 = vector.broadcast %217 : vector<2x1xf32> to vector<2x32xf32>
      %219 = arith.mulf %209, %218 : vector<2x32xf32>
      %c0_80 = arith.constant 0 : index
      %c0_81 = arith.constant 0 : index
      %220 = vector.load %arg6[%c0_80, %c0_81] : memref<1x32xf32, #tpu.memory_space<vmem>>, vector<1x32xf32>
      %221 = vector.broadcast %220 : vector<1x32xf32> to vector<2x32xf32>
      %222 = arith.mulf %219, %221 : vector<2x32xf32>
      %c0_82 = arith.constant 0 : index
      %c0_83 = arith.constant 0 : index
      %223 = vector.load %arg7[%c0_82, %c0_83] : memref<1x32xf32, #tpu.memory_space<vmem>>, vector<1x32xf32>
      %224 = vector.broadcast %223 : vector<1x32xf32> to vector<2x32xf32>
      %225 = arith.addf %222, %224 : vector<2x32xf32>
      %c0_84 = arith.constant 0 : index
      %c0_85 = arith.constant 0 : index
      %226 = vector.load %arg8[%c0_84, %c0_85] : memref<2x32xf32, #tpu.memory_space<vmem>>, vector<2x32xf32>
      tpu.vector_store %arg8[%c0_84, %c0_85], %225 {strides = array<i32>} : memref<2x32xf32, #tpu.memory_space<vmem>>, vector<2x32xf32>,
    } else {
    }
    return
  }
  func.func @transform_0(%arg0: i32) -> (i32, i32) {
    %c0_i32 = arith.constant 0 : i32
    %c0_i32_0 = arith.constant 0 : i32
    %c0_i32_1 = arith.constant 0 : i32
    return %c0_i32, %c0_i32_0 : i32, i32
  }
  func.func @transform_1(%arg0: i32) -> (i32, i32) {
    %c0_i32 = arith.constant 0 : i32
    %c0_i32_0 = arith.constant 0 : i32
    %c0_i32_1 = arith.constant 0 : i32
    return %c0_i32, %c0_i32_0 : i32, i32
  }
  func.func @transform_2(%arg0: i32) -> (i32, i32, i32) {
    %c0_i32 = arith.constant 0 : i32
    %c0_i32_0 = arith.constant 0 : i32
    %c0_i32_1 = arith.constant 0 : i32
    return %arg0, %c0_i32, %c0_i32_0 : i32, i32, i32
  }
  func.func @transform_3(%arg0: i32) -> (i32, i32, i32) {
    %c0_i32 = arith.constant 0 : i32
    %c0_i32_0 = arith.constant 0 : i32
    %c0_i32_1 = arith.constant 0 : i32
    return %arg0, %c0_i32, %c0_i32_0 : i32, i32, i32
  }
  func.func @transform_4(%arg0: i32) -> (i32, i32, i32) {
    %c0_i32 = arith.constant 0 : i32
    %c0_i32_0 = arith.constant 0 : i32
    %c0_i32_1 = arith.constant 0 : i32
    return %arg0, %c0_i32, %c0_i32_0 : i32, i32, i32
  }
  func.func @transform_5(%arg0: i32) -> (i32, i32) {
    %c0_i32 = arith.constant 0 : i32
    %c0_i32_0 = arith.constant 0 : i32
    %c0_i32_1 = arith.constant 0 : i32
    return %c0_i32, %c0_i32_0 : i32, i32
  }
  func.func @transform_6(%arg0: i32) -> (i32, i32) {
    %c0_i32 = arith.constant 0 : i32
    %c0_i32_0 = arith.constant 0 : i32
    %c0_i32_1 = arith.constant 0 : i32
    return %c0_i32, %c0_i32_0 : i32, i32
  }
  func.func @transform_7(%arg0: i32) -> (i32, i32) {
    %c0_i32 = arith.constant 0 : i32
    %c0_i32_0 = arith.constant 0 : i32
    %c0_i32_1 = arith.constant 0 : i32
    return %c0_i32, %c0_i32_0 : i32, i32
  }
}

</mosaic_0001>

<llo_original>
// kernel: tpu_custom_call.1
$region0: #{tpu_custom_call.1}
  #allocation0 [shape = 'u32[]', space=smem, size = 0x4, offset = 0x4, fixed_abs, tag = 'smem constant byte address 0x4 - core index']
  #allocation1 [shape = 'u32[144,128]{1,0:T(1,128)}', space=vmem, size = 0x12000, scoped, tag = 'internal scratch']
  #allocation2 [shape = 'f32[64,128]{1,0:T(8,128)}', space=vmem, size = 0x8000, scoped, tag = 'scratch operand']
  #allocation3 [shape = 'f32[64,128]{1,0:T(8,128)}', space=vmem, size = 0x8000, scoped, tag = 'scratch operand']
  %s0 = inlined_call_operand.vmem [shape: f32[64,16], index: 0, kind: input, shape index: {}]
  %s1 = inlined_call_operand.vmem [shape: f32[16,128], index: 1, kind: input, shape index: {}]
  %s2 = inlined_call_operand.hbm [shape: f32[2,128,128], index: 2, kind: input, shape index: {}]
  %s3 = inlined_call_operand.hbm [shape: f32[2,128,128], index: 3, kind: input, shape index: {}]
  %s4 = inlined_call_operand.vmem [shape: f32[2,1,128], index: 4, kind: input, shape index: {}]
  %s5 = inlined_call_operand.vmem [shape: f32[1,32], index: 5, kind: input, shape index: {}]
  %s6 = inlined_call_operand.vmem [shape: f32[1,32], index: 6, kind: input, shape index: {}]
  %s7 = inlined_call_operand.hbm [shape: f32[2,32], index: 7, kind: output, shape index: {}]
  %s8 = sld [smem:[#allocation0]]
  $region113: #{tpu_custom_call.1} parent=0
    _
  %s10 = ssub.s32 1, %s8
  %s11 = scalar_select 0, %s10, %s8
  $region1: #{tpu_custom_call.1} parent=0
    #allocation4 [shape = 'u8[131072]{0}', space=vmem, size = 0x20000, scoped, tag = 'input window, operand 2']
    #allocation5 [shape = 's32[2]{0}', space=sflag, size = 0x8, scoped, tag = 'scoped memory for tpu_custom_call.1']
    #allocation6 [shape = 's32[2]{0}', space=sflag, size = 0x8, scoped, tag = 'scoped memory for tpu_custom_call.1']
    #allocation7 [shape = 'u8[131072]{0}', space=vmem, size = 0x20000, scoped, tag = 'input window, operand 3']
    #allocation8 [shape = 's32[2]{0}', space=sflag, size = 0x8, scoped, tag = 'scoped memory for tpu_custom_call.1']
    #allocation9 [shape = 'u8[1024]{0}', space=vmem, size = 0x400, scoped, tag = 'output window, operand 0, single buffered']
    %12 = vsyncpa [#allocation5], 0
    %s13 = scalar_lea.sflag [#allocation5], 1
    %14 = vsyncpa %s13, 0
    %15 = vsyncpa [#allocation8], 0
    %s16 = scalar_lea.sflag [#allocation8], 1
    %17 = vsyncpa %s16, 0
    %18 = vsyncpa [#allocation6], 0
    loop: start=0, step=1, limit=4
    $region2: #{tpu_custom_call.1} parent=1 // loop_pre_header
      _
    $region3: #{tpu_custom_call.1} parent=1 // loop_header
      %s20 = sphi 0, %s24
      %p21 = scmp.ge.s32.totalorder %s20, 4
      %s28 = sphi 0, %s28
      %s30 = sphi 0, %s28
      %s31 = sphi 0, %s30
      %s45 = sphi 0, %s31
      %s49 = sphi 0, %s49
      %s51 = sphi 0, %s49
      %s52 = sphi 0, %s51
      %s66 = sphi 0, %s52
      %s72 = sphi 0, %s74
      %s75 = sphi 0, %s72
      %s76 = sphi 0, %s75
      %s92 = sphi 0, %s76
      %s98 = sphi 0, %s100
      %s101 = sphi 0, %s98
      %s102 = sphi 0, %s101
      %s118 = sphi 0, %s102
      %s124 = sphi 0, %s126
      %s127 = sphi 0, %s124
      %s128 = sphi 0, %s127
      %s144 = sphi 0, %s128
      %s148 = sphi 0, %s148
      %s150 = sphi 0, %s148
      %s151 = sphi 0, %s150
      %s165 = sphi 0, %s151
      %s169 = sphi 0, %s169
      %s171 = sphi 0, %s169
      %s172 = sphi 0, %s171
      %s186 = sphi 0, %s172
      %s190 = sphi 0, %s190
      %s192 = sphi 0, %s190
      %s193 = sphi 0, %s192
      %s207 = sphi 0, %s193
    $region4: #{tpu_custom_call.1} parent=1 // loop_header_branch
      %23 = sbr.rel (%p21) target = $region8
    $region5: #{tpu_custom_call.1} parent=1 // loop_body
      %s25 = ssub.s32 %s20, 1
      %s26 = ssub.s32 %s20, 2
      %s27 = sadd.s32 %s20, 1
      %s29 = sadd.s32 %s28, 1
      %p32 = scmp.eq.s32.totalorder %s20, 1
      %p33 = scmp.ne.s32.totalorder %s28, %s30
      %p34 = scmp.eq.s32.totalorder %s20, 0
      %p35 = por %p33, %p34
      %p36 = scmp.ne.s32.totalorder %s28, %s30
      %p37 = scmp.eq.s32.totalorder %s25, 1
      %p38 = por %p36, %p37
      %p39 = scmp.ne.s32.totalorder %s30, %s31
      %p40 = scmp.eq.s32.totalorder %s25, 0
      %p41 = por %p39, %p40
      %p42 = scmp.ne.s32.totalorder %s30, %s31
      %p43 = scmp.eq.s32.totalorder %s26, 1
      %p44 = por %p42, %p43
      %p46 = scmp.ne.s32.totalorder %s31, %s45
      %p47 = scmp.eq.s32.totalorder %s26, 0
      %p48 = por %p46, %p47
      %s50 = sadd.s32 %s49, 1
      %p53 = scmp.eq.s32.totalorder %s20, 1
      %p54 = scmp.ne.s32.totalorder %s49, %s51
      %p55 = scmp.eq.s32.totalorder %s20, 0
      %p56 = por %p54, %p55
      %p57 = scmp.ne.s32.totalorder %s49, %s51
      %p58 = scmp.eq.s32.totalorder %s25, 1
      %p59 = por %p57, %p58
      %p60 = scmp.ne.s32.totalorder %s51, %s52
      %p61 = scmp.eq.s32.totalorder %s25, 0
      %p62 = por %p60, %p61
      %p63 = scmp.ne.s32.totalorder %s51, %s52
      %p64 = scmp.eq.s32.totalorder %s26, 1
      %p65 = por %p63, %p64
      %p67 = scmp.ne.s32.totalorder %s52, %s66
      %p68 = scmp.eq.s32.totalorder %s26, 0
      %p69 = por %p67, %p68
      %s70 = ssub.s32 %s20, %s27
      %p71 = scmp.eq.s32.totalorder %s70, 0
      %s73 = sadd.s32 %s72, 1
      %s74 = scalar_select %p71, %s72, %s73
      %p77 = pneg %p71
      %p78 = scmp.eq.s32.totalorder %s20, 1
      %p79 = por %p77, %p78
      %p80 = scmp.ne.s32.totalorder %s72, %s75
      %p81 = scmp.eq.s32.totalorder %s20, 0
      %p82 = por %p80, %p81
      %p83 = scmp.ne.s32.totalorder %s72, %s75
      %p84 = scmp.eq.s32.totalorder %s25, 1
      %p85 = por %p83, %p84
      %p86 = scmp.ne.s32.totalorder %s75, %s76
      %p87 = scmp.eq.s32.totalorder %s25, 0
      %p88 = por %p86, %p87
      %p89 = scmp.ne.s32.totalorder %s75, %s76
      %p90 = scmp.eq.s32.totalorder %s26, 1
      %p91 = por %p89, %p90
      %p93 = scmp.ne.s32.totalorder %s76, %s92
      %p94 = scmp.eq.s32.totalorder %s26, 0
      %p95 = por %p93, %p94
      %s96 = ssub.s32 %s20, %s27
      %p97 = scmp.eq.s32.totalorder %s96, 0
      %s99 = sadd.s32 %s98, 1
      %s100 = scalar_select %p97, %s98, %s99
      %p103 = pneg %p97
      %p104 = scmp.eq.s32.totalorder %s20, 1
      %p105 = por %p103, %p104
      %p106 = scmp.ne.s32.totalorder %s98, %s101
      %p107 = scmp.eq.s32.totalorder %s20, 0
      %p108 = por %p106, %p107
      %p109 = scmp.ne.s32.totalorder %s98, %s101
      %p110 = scmp.eq.s32.totalorder %s25, 1
      %p111 = por %p109, %p110
      %p112 = scmp.ne.s32.totalorder %s101, %s102
      %p113 = scmp.eq.s32.totalorder %s25, 0
      %p114 = por %p112, %p113
      %p115 = scmp.ne.s32.totalorder %s101, %s102
      %p116 = scmp.eq.s32.totalorder %s26, 1
      %p117 = por %p115, %p116
      %p119 = scmp.ne.s32.totalorder %s102, %s118
      %p120 = scmp.eq.s32.totalorder %s26, 0
      %p121 = por %p119, %p120
      %s122 = ssub.s32 %s20, %s27
      %p123 = scmp.eq.s32.totalorder %s122, 0
      %s125 = sadd.s32 %s124, 1
      %s126 = scalar_select %p123, %s124, %s125
      %p129 = pneg %p123
      %p130 = scmp.eq.s32.totalorder %s20, 1
      %p131 = por %p129, %p130
      %p132 = scmp.ne.s32.totalorder %s124, %s127
      %p133 = scmp.eq.s32.totalorder %s20, 0
      %p134 = por %p132, %p133
      %p135 = scmp.ne.s32.totalorder %s124, %s127
      %p136 = scmp.eq.s32.totalorder %s25, 1
      %p137 = por %p135, %p136
      %p138 = scmp.ne.s32.totalorder %s127, %s128
      %p139 = scmp.eq.s32.totalorder %s25, 0
      %p140 = por %p138, %p139
      %p141 = scmp.ne.s32.totalorder %s127, %s128
      %p142 = scmp.eq.s32.totalorder %s26, 1
      %p143 = por %p141, %p142
      %p145 = scmp.ne.s32.totalorder %s128, %s144
      %p146 = scmp.eq.s32.totalorder %s26, 0
      %p147 = por %p145, %p146
      %s149 = sadd.s32 %s148, 1
      %p152 = scmp.eq.s32.totalorder %s20, 1
      %p153 = scmp.ne.s32.totalorder %s148, %s150
      %p154 = scmp.eq.s32.totalorder %s20, 0
      %p155 = por %p153, %p154
      %p156 = scmp.ne.s32.totalorder %s148, %s150
      %p157 = scmp.eq.s32.totalorder %s25, 1
      %p158 = por %p156, %p157
      %p159 = scmp.ne.s32.totalorder %s150, %s151
      %p160 = scmp.eq.s32.totalorder %s25, 0
      %p161 = por %p159, %p160
      %p162 = scmp.ne.s32.totalorder %s150, %s151
      %p163 = scmp.eq.s32.totalorder %s26, 1
      %p164 = por %p162, %p163
      %p166 = scmp.ne.s32.totalorder %s151, %s165
      %p167 = scmp.eq.s32.totalorder %s26, 0
      %p168 = por %p166, %p167
      %s170 = sadd.s32 %s169, 1
      %p173 = scmp.eq.s32.totalorder %s20, 1
      %p174 = scmp.ne.s32.totalorder %s169, %s171
      %p175 = scmp.eq.s32.totalorder %s20, 0
      %p176 = por %p174, %p175
      %p177 = scmp.ne.s32.totalorder %s169, %s171
      %p178 = scmp.eq.s32.totalorder %s25, 1
      %p179 = por %p177, %p178
      %p180 = scmp.ne.s32.totalorder %s171, %s172
      %p181 = scmp.eq.s32.totalorder %s25, 0
      %p182 = por %p180, %p181
      %p183 = scmp.ne.s32.totalorder %s171, %s172
      %p184 = scmp.eq.s32.totalorder %s26, 1
      %p185 = por %p183, %p184
      %p187 = scmp.ne.s32.totalorder %s172, %s186
      %p188 = scmp.eq.s32.totalorder %s26, 0
      %p189 = por %p187, %p188
      %s191 = sadd.s32 %s190, 1
      %p194 = scmp.eq.s32.totalorder %s20, 1
      %p195 = scmp.ne.s32.totalorder %s190, %s192
      %p196 = scmp.eq.s32.totalorder %s20, 0
      %p197 = por %p195, %p196
      %p198 = scmp.ne.s32.totalorder %s190, %s192
      %p199 = scmp.eq.s32.totalorder %s25, 1
      %p200 = por %p198, %p199
      %p201 = scmp.ne.s32.totalorder %s192, %s193
      %p202 = scmp.eq.s32.totalorder %s25, 0
      %p203 = por %p201, %p202
      %p204 = scmp.ne.s32.totalorder %s192, %s193
      %p205 = scmp.eq.s32.totalorder %s26, 1
      %p206 = por %p204, %p205
      %p208 = scmp.ne.s32.totalorder %s193, %s207
      %p209 = scmp.eq.s32.totalorder %s26, 0
      %p210 = por %p208, %p209
      %p211 = scmp.le.s32.totalorder 1, %s20
      %p212 = scmp.lt.s32.totalorder %s20, 3
      %p213 = pnand %p211, %p212
      %p214 = pneg %p213
      // Predicated region
      $region9: #{tpu_custom_call.1} parent=5 // pred_check
        _
      $region10: #{tpu_custom_call.1} parent=5 // pred_check_branch
        %216 = sbr.rel (%p213) target = $region12
      $region11: #{tpu_custom_call.1} parent=5 // pred_region
        %s217 = ssub.s32 %s20, 1
        // Predicated region
        $region13: #{tpu_custom_call.1} parent=11 // pred_check
          %p218 = pneg %p41
        $region14: #{tpu_custom_call.1} parent=11 // pred_check_branch
          %220 = sbr.rel (%p218) target = $region16
        $region15: #{tpu_custom_call.1} parent=11 // pred_region
          _
        $region16: #{tpu_custom_call.1} parent=11 // pred_fallthru
          _
        // Predicated region
        $region17: #{tpu_custom_call.1} parent=11 // pred_check
          %p221 = pneg %p62
        $region18: #{tpu_custom_call.1} parent=11 // pred_check_branch
          %223 = sbr.rel (%p221) target = $region20
        $region19: #{tpu_custom_call.1} parent=11 // pred_region
          _
        $region20: #{tpu_custom_call.1} parent=11 // pred_fallthru
          _
        // Predicated region
        $region21: #{tpu_custom_call.1} parent=11 // pred_check
          %p224 = pneg %p161
        $region22: #{tpu_custom_call.1} parent=11 // pred_check_branch
          %226 = sbr.rel (%p224) target = $region24
        $region23: #{tpu_custom_call.1} parent=11 // pred_region
          _
        $region24: #{tpu_custom_call.1} parent=11 // pred_fallthru
          _
        // Predicated region
        $region25: #{tpu_custom_call.1} parent=11 // pred_check
          %p227 = pneg %p182
        $region26: #{tpu_custom_call.1} parent=11 // pred_check_branch
          %229 = sbr.rel (%p227) target = $region28
        $region27: #{tpu_custom_call.1} parent=11 // pred_region
          _
        $region28: #{tpu_custom_call.1} parent=11 // pred_fallthru
          _
      $region12: #{tpu_custom_call.1} parent=5 // pred_fallthru
        _
      %p230 = scmp.lt.s32.totalorder %s20, 2
      // Predicated region
      $region29: #{tpu_custom_call.1} parent=5 // pred_check
        %p231 = pneg %p230
      $region30: #{tpu_custom_call.1} parent=5 // pred_check_branch
        %233 = sbr.rel (%p231) target = $region32
      $region31: #{tpu_custom_call.1} parent=5 // pred_region
        // Predicated region
        $region33: #{tpu_custom_call.1} parent=31 // pred_check
          %p234 = pneg %p82
        $region34: #{tpu_custom_call.1} parent=31 // pred_check_branch
          %236 = sbr.rel (%p234) target = $region36
        $region35: #{tpu_custom_call.1} parent=31 // pred_region
          %s237 = sand.u32 %s72, 1
          %s238 = scalar_lea.sflag [#allocation5], %s237
          %s239 = sand.u32 %s72, 1
          %s240 = smul.addr %s239, 128
          %s241 = scalar_lea.vmem [#allocation4], %s240
          %s243 = ssub.s32 2048, 2048
          %244 = vsyncadd %s238, %s243
          %s245 = smul.addr %s20, 16
          %s246 = smul.addr %s245, 128
          %s247 = scalar_lea.hbm %s2, %s246
          %s248 = sshll.u32 %s241, 4
          %s249 = int_to_ptr.vmem [resolvable:$true] %s248
          %254 = dma.hbm_to_vmem [thread:$0]  %s247, 2048, %s249, %s238, 128, 128, 8
        $region36: #{tpu_custom_call.1} parent=31 // pred_fallthru
          _
        // Predicated region
        $region37: #{tpu_custom_call.1} parent=31 // pred_check
          %p255 = pneg %p108
        $region38: #{tpu_custom_call.1} parent=31 // pred_check_branch
          %257 = sbr.rel (%p255) target = $region40
        $region39: #{tpu_custom_call.1} parent=31 // pred_region
          %s258 = sand.u32 %s98, 1
          %s259 = scalar_lea.sflag [#allocation8], %s258
          %s260 = sand.u32 %s98, 1
          %s261 = smul.addr %s260, 128
          %s262 = scalar_lea.vmem [#allocation7], %s261
          %s264 = ssub.s32 2048, 2048
          %265 = vsyncadd %s259, %s264
          %s266 = smul.addr %s20, 16
          %s267 = smul.addr %s266, 128
          %s268 = scalar_lea.hbm %s3, %s267
          %s269 = sshll.u32 %s262, 4
          %s270 = int_to_ptr.vmem [resolvable:$true] %s269
          %275 = dma.hbm_to_vmem [thread:$0]  %s268, 2048, %s270, %s259, 128, 128, 8
        $region40: #{tpu_custom_call.1} parent=31 // pred_fallthru
          _
        // Predicated region
        $region41: #{tpu_custom_call.1} parent=31 // pred_check
          %p276 = pneg %p134
        $region42: #{tpu_custom_call.1} parent=31 // pred_check_branch
          %278 = sbr.rel (%p276) target = $region44
        $region43: #{tpu_custom_call.1} parent=31 // pred_region
          %p279 = scmp.lt.s32.totalorder %s20, 1
          %s280 = scalar_select %p279, %s20, 1
          %s281 = scalar_lea.vmem %s4, %s280
        $region44: #{tpu_custom_call.1} parent=31 // pred_fallthru
          _
      $region32: #{tpu_custom_call.1} parent=5 // pred_fallthru
        _
      %p282 = scmp.le.s32.totalorder 1, %s20
      %p283 = scmp.lt.s32.totalorder %s20, 3
      %p284 = pnand %p282, %p283
      %p285 = pneg %p284
      // Predicated region
      $region45: #{tpu_custom_call.1} parent=5 // pred_check
        _
      $region46: #{tpu_custom_call.1} parent=5 // pred_check_branch
        %287 = sbr.rel (%p284) target = $region48
      $region47: #{tpu_custom_call.1} parent=5 // pred_region
        %s288 = ssub.s32 %s20, 1
        %s289 = sand.u32 %s75, 1
        %s290 = scalar_lea.sflag [#allocation5], %s289
        %s291 = sand.u32 %s75, 1
        %s292 = smul.addr %s291, 128
        %s293 = scalar_lea.vmem [#allocation4], %s292
        // Predicated region
        $region49: #{tpu_custom_call.1} parent=47 // pred_check
          %p294 = pneg %p88
        $region50: #{tpu_custom_call.1} parent=47 // pred_check_branch
          %296 = sbr.rel (%p294) target = $region52
        $region51: #{tpu_custom_call.1} parent=47 // pred_region
          %297 = dma.done %s290, 2048
        $region52: #{tpu_custom_call.1} parent=47 // pred_fallthru
          _
        %s298 = sand.u32 %s101, 1
        %s299 = scalar_lea.sflag [#allocation8], %s298
        %s300 = sand.u32 %s101, 1
        %s301 = smul.addr %s300, 128
        %s302 = scalar_lea.vmem [#allocation7], %s301
        // Predicated region
        $region53: #{tpu_custom_call.1} parent=47 // pred_check
          %p303 = pneg %p114
        $region54: #{tpu_custom_call.1} parent=47 // pred_check_branch
          %305 = sbr.rel (%p303) target = $region56
        $region55: #{tpu_custom_call.1} parent=47 // pred_region
          %306 = dma.done %s299, 2048
        $region56: #{tpu_custom_call.1} parent=47 // pred_fallthru
          _
        %p307 = pneg %p41
        %p308 = pneg %p38
        %p309 = pneg %p62
        %p310 = pneg %p59
        %s311 = sand.u32 %s75, 1
        %s312 = scalar_lea.sflag [#allocation5], %s311
        %s313 = sand.u32 %s75, 1
        %s314 = smul.addr %s313, 128
        %s315 = scalar_lea.vmem [#allocation4], %s314
        %p316 = pneg %p88
        %p317 = pneg %p85
        %s318 = sand.u32 %s101, 1
        %s319 = scalar_lea.sflag [#allocation8], %s318
        %s320 = sand.u32 %s101, 1
        %s321 = smul.addr %s320, 128
        %s322 = scalar_lea.vmem [#allocation7], %s321
        %p323 = pneg %p114
        %p324 = pneg %p111
        %p325 = scmp.lt.s32.totalorder %s25, 1
        %s326 = scalar_select %p325, %s25, 1
        %s327 = scalar_lea.vmem %s4, %s326
        %p328 = pneg %p140
        %p329 = pneg %p137
        %p330 = pneg %p161
        %p331 = pneg %p158
        %p332 = pneg %p182
        %p333 = pneg %p179
        %p334 = pneg %p203
        %p335 = pneg %p200
        %p336 = scmp.lt.s32.totalorder %s25, 1
        %s337 = scalar_select %p336, %s25, 1
        %s338 = scalar_lea.vmem %s4, %s337
        %v339 = vld [vmem:[%s338] sm:$0x1]
        %p340 = scmp.eq.s32.totalorder %s25, 0
        // Predicated region
        $region57: #{tpu_custom_call.1} parent=47 // pred_check
          %p341 = pneg %p340
        $region58: #{tpu_custom_call.1} parent=47 // pred_check_branch
          %343 = sbr.rel (%p341) target = $region60
        $region59: #{tpu_custom_call.1} parent=47 // pred_region
          %v344 = vld [vmem:[%s0] sm:$0xff]
          %v345 = vld [vmem:[%s0 + $0x8] sm:$0xff]
          %v346 = vld [vmem:[%s0 + $0x10] sm:$0xff]
          %v347 = vld [vmem:[%s0 + $0x18] sm:$0xff]
          %v348 = vld [vmem:[%s0 + $0x20] sm:$0xff]
          %v349 = vld [vmem:[%s0 + $0x28] sm:$0xff]
          %v350 = vld [vmem:[%s0 + $0x30] sm:$0xff]
          %v351 = vld [vmem:[%s0 + $0x38] sm:$0xff]
          %v352 = vld [vmem:[%s1] sm:$0xff]
          %v353 = vld [vmem:[%s1 + $0x8] sm:$0xff]
          %v355 = vlaneseq
          %v356 = vshrl.u32 %v355, 7
          %v357 = vsub.s32 0, %v356
          %v358 = vrot.slane %v339, %v357
          %vm360 = vcmask 130048
          %v362 = vsel %vm360, %v344, 0
          %v365 = vsel %vm360, %v345, 0
          %v368 = vsel %vm360, %v346, 0
          %v371 = vsel %vm360, %v347, 0
          %v374 = vsel %vm360, %v348, 0
          %v377 = vsel %vm360, %v349, 0
          %v380 = vsel %vm360, %v350, 0
          %v383 = vsel %vm360, %v351, 0
          %385 = vmatprep.subr.mxu0 0.0
          %386 = vmatpush1.msra.mxu0 0.0
          %387 = vmatprep.subr.mxu0 0.0
          %388 = vmatpush1.msra.mxu0 0.0
          %389 = vmatprep.subr.mxu0 0.0
          %390 = vmatpush1.msra.mxu0 0.0
          %391 = vmatprep.subr.mxu0 0.0
          %392 = vmatpush1.msra.mxu0 0.0
          %393 = vmatprep.subr.mxu0 0.0
          %394 = vmatpush1.msra.mxu0 0.0
          %395 = vmatprep.subr.mxu0 0.0
          %396 = vmatpush1.msra.mxu0 0.0
          %397 = vmatprep.subr.mxu0 0.0
          %398 = vmatpush1.msra.mxu0 0.0
          %399 = vmatprep.subr.mxu0 0.0
          %400 = vmatpush1.msra.mxu0 0.0
          %401 = vmatprep.subr.mxu0 0.0
          %402 = vmatpush1.msra.mxu0 0.0
          %403 = vmatprep.subr.mxu0 0.0
          %404 = vmatpush1.msra.mxu0 0.0
          %405 = vmatprep.subr.mxu0 0.0
          %406 = vmatpush1.msra.mxu0 0.0
          %407 = vmatprep.subr.mxu0 0.0
          %408 = vmatpush1.msra.mxu0 0.0
          %409 = vmatprep.subr.mxu0 0.0
          %410 = vmatpush1.msra.mxu0 0.0
          %411 = vmatprep.subr.mxu0 0.0
          %412 = vmatpush1.msra.mxu0 0.0
          %413 = vmatprep.subr.mxu0 0.0
          %414 = vmatpush1.msra.mxu0 %v353
          %415 = vmatprep.subr.mxu0 0.0
          %416 = vmatpush1.msra.mxu0 %v352
          %417 = vmatprep.subr.mxu0 0.0
          %418 = vmatpush2.msra.mxu0 0.0
          %419 = vmatprep.subr.mxu0 0.0
          %420 = vmatpush2.msra.mxu0 0.0
          %421 = vmatprep.subr.mxu0 0.0
          %422 = vmatpush2.msra.mxu0 0.0
          %423 = vmatprep.subr.mxu0 0.0
          %424 = vmatpush2.msra.mxu0 0.0
          %425 = vmatprep.subr.mxu0 0.0
          %426 = vmatpush2.msra.mxu0 0.0
          %427 = vmatprep.subr.mxu0 0.0
          %428 = vmatpush2.msra.mxu0 0.0
          %429 = vmatprep.subr.mxu0 0.0
          %430 = vmatpush2.msra.mxu0 0.0
          %431 = vmatprep.subr.mxu0 0.0
          %432 = vmatpush2.msra.mxu0 0.0
          %433 = vmatprep.subr.mxu0 0.0
          %434 = vmatpush2.msra.mxu0 0.0
          %435 = vmatprep.subr.mxu0 0.0
          %436 = vmatpush2.msra.mxu0 0.0
          %437 = vmatprep.subr.mxu0 0.0
          %438 = vmatpush2.msra.mxu0 0.0
          %439 = vmatprep.subr.mxu0 0.0
          %440 = vmatpush2.msra.mxu0 0.0
          %441 = vmatprep.subr.mxu0 0.0
          %442 = vmatpush2.msra.mxu0 0.0
          %443 = vmatprep.subr.mxu0 0.0
          %444 = vmatpush2.msra.mxu0 0.0
          %445 = vmatprep.subr.mxu0 0.0
          %446 = vmatpush2.msra.mxu0 0.0
          %447 = vmatprep.subr.mxu0 0.0
          %448 = vmatpush2.msra.mxu0 0.0
          %449 = vmatprep.mubr.f32.mxu0 0.0
          %450 = vmatmul.mubr.f32.gmra.mxu0 %v362
          %v451 = vpop.f32.mrf.mxu0
          %v452 = vadd.f32 %v358, %v451
          %v453 = vpop.f32.mrf.mxu0
          %454 = vmatprep.mubr.f32.mxu0 0.0
          %455 = vmatmul.mubr.f32.gmra.mxu0 %v365
          %v456 = vpop.f32.mrf.mxu0
          %v457 = vadd.f32 %v358, %v456
          %v458 = vpop.f32.mrf.mxu0
          %459 = vmatprep.mubr.f32.mxu0 0.0
          %460 = vmatmul.mubr.f32.gmra.mxu0 %v368
          %v461 = vpop.f32.mrf.mxu0
          %v462 = vadd.f32 %v358, %v461
          %v463 = vpop.f32.mrf.mxu0
          %464 = vmatprep.mubr.f32.mxu0 0.0
          %465 = vmatmul.mubr.f32.gmra.mxu0 %v371
          %v466 = vpop.f32.mrf.mxu0
          %v467 = vadd.f32 %v358, %v466
          %v468 = vpop.f32.mrf.mxu0
          %469 = vmatprep.mubr.f32.mxu0 0.0
          %470 = vmatmul.mubr.f32.gmra.mxu0 %v374
          %v471 = vpop.f32.mrf.mxu0
          %v472 = vadd.f32 %v358, %v471
          %v473 = vpop.f32.mrf.mxu0
          %474 = vmatprep.mubr.f32.mxu0 0.0
          %475 = vmatmul.mubr.f32.gmra.mxu0 %v377
          %v476 = vpop.f32.mrf.mxu0
          %v477 = vadd.f32 %v358, %v476
          %v478 = vpop.f32.mrf.mxu0
          %479 = vmatprep.mubr.f32.mxu0 0.0
          %480 = vmatmul.mubr.f32.gmra.mxu0 %v380
          %v481 = vpop.f32.mrf.mxu0
          %v482 = vadd.f32 %v358, %v481
          %v483 = vpop.f32.mrf.mxu0
          %484 = vmatprep.mubr.f32.mxu0 0.0
          %485 = vmatmul.mubr.f32.gmra.mxu0 %v383
          %v486 = vpop.f32.mrf.mxu0
          %v487 = vadd.f32 %v358, %v486
          %v488 = vpop.f32.mrf.mxu0
          %489 = vdwg.mxu0
          %490 = vst [vmem:[#allocation2] sm:$0xff] %v452
          %491 = vst [vmem:[#allocation2 + $0x8] sm:$0xff] %v457
          %492 = vst [vmem:[#allocation2 + $0x10] sm:$0xff] %v462
          %493 = vst [vmem:[#allocation2 + $0x18] sm:$0xff] %v467
          %494 = vst [vmem:[#allocation2 + $0x20] sm:$0xff] %v472
          %495 = vst [vmem:[#allocation2 + $0x28] sm:$0xff] %v477
          %496 = vst [vmem:[#allocation2 + $0x30] sm:$0xff] %v482
          %497 = vst [vmem:[#allocation2 + $0x38] sm:$0xff] %v487
        $region60: #{tpu_custom_call.1} parent=47 // pred_fallthru
          _
        %p498 = scmp.gt.s32.totalorder %s25, 0
        // Predicated region
        $region61: #{tpu_custom_call.1} parent=47 // pred_check
          %p499 = pneg %p498
        $region62: #{tpu_custom_call.1} parent=47 // pred_check_branch
          %501 = sbr.rel (%p499) target = $region64
        $region63: #{tpu_custom_call.1} parent=47 // pred_region
          %v502 = vld [vmem:[#allocation3] sm:$0xff]
          %v503 = vld [vmem:[#allocation3 + $0x8] sm:$0xff]
          %v504 = vld [vmem:[#allocation3 + $0x10] sm:$0xff]
          %v505 = vld [vmem:[#allocation3 + $0x18] sm:$0xff]
          %v506 = vld [vmem:[#allocation3 + $0x20] sm:$0xff]
          %v507 = vld [vmem:[#allocation3 + $0x28] sm:$0xff]
          %v508 = vld [vmem:[#allocation3 + $0x30] sm:$0xff]
          %v509 = vld [vmem:[#allocation3 + $0x38] sm:$0xff]
          %v510 = vld [vmem:[%s293] sm:$0xff]
          %v511 = vld [vmem:[%s293 + $0x8] sm:$0xff]
          %v512 = vld [vmem:[%s293 + $0x10] sm:$0xff]
          %v513 = vld [vmem:[%s293 + $0x18] sm:$0xff]
          %v514 = vld [vmem:[%s293 + $0x20] sm:$0xff]
          %v515 = vld [vmem:[%s293 + $0x28] sm:$0xff]
          %v516 = vld [vmem:[%s293 + $0x30] sm:$0xff]
          %v517 = vld [vmem:[%s293 + $0x38] sm:$0xff]
          %v518 = vld [vmem:[%s293 + $0x40] sm:$0xff]
          %v519 = vld [vmem:[%s293 + $0x48] sm:$0xff]
          %v520 = vld [vmem:[%s293 + $0x50] sm:$0xff]
          %v521 = vld [vmem:[%s293 + $0x58] sm:$0xff]
          %v522 = vld [vmem:[%s293 + $0x60] sm:$0xff]
          %v523 = vld [vmem:[%s293 + $0x68] sm:$0xff]
          %v524 = vld [vmem:[%s293 + $0x70] sm:$0xff]
          %v525 = vld [vmem:[%s293 + $0x78] sm:$0xff]
          %v527 = vlaneseq
          %v528 = vshrl.u32 %v527, 7
          %v529 = vsub.s32 0, %v528
          %v530 = vrot.slane %v339, %v529
          %532 = vmatprep.subr.mxu0 0.0
          %533 = vmatpush1.msra.mxu0 %v525
          %534 = vmatprep.subr.mxu0 0.0
          %535 = vmatpush1.msra.mxu0 %v524
          %536 = vmatprep.subr.mxu0 0.0
          %537 = vmatpush1.msra.mxu0 %v523
          %538 = vmatprep.subr.mxu0 0.0
          %539 = vmatpush1.msra.mxu0 %v522
          %540 = vmatprep.subr.mxu0 0.0
          %541 = vmatpush1.msra.mxu0 %v521
          %542 = vmatprep.subr.mxu0 0.0
          %543 = vmatpush1.msra.mxu0 %v520
          %544 = vmatprep.subr.mxu0 0.0
          %545 = vmatpush1.msra.mxu0 %v519
          %546 = vmatprep.subr.mxu0 0.0
          %547 = vmatpush1.msra.mxu0 %v518
          %548 = vmatprep.subr.mxu0 0.0
          %549 = vmatpush1.msra.mxu0 %v517
          %550 = vmatprep.subr.mxu0 0.0
          %551 = vmatpush1.msra.mxu0 %v516
          %552 = vmatprep.subr.mxu0 0.0
          %553 = vmatpush1.msra.mxu0 %v515
          %554 = vmatprep.subr.mxu0 0.0
          %555 = vmatpush1.msra.mxu0 %v514
          %556 = vmatprep.subr.mxu0 0.0
          %557 = vmatpush1.msra.mxu0 %v513
          %558 = vmatprep.subr.mxu0 0.0
          %559 = vmatpush1.msra.mxu0 %v512
          %560 = vmatprep.subr.mxu0 0.0
          %561 = vmatpush1.msra.mxu0 %v511
          %562 = vmatprep.subr.mxu0 0.0
          %563 = vmatpush1.msra.mxu0 %v510
          %564 = vmatprep.subr.mxu0 0.0
          %565 = vmatpush2.msra.mxu0 0.0
          %566 = vmatprep.subr.mxu0 0.0
          %567 = vmatpush2.msra.mxu0 0.0
          %568 = vmatprep.subr.mxu0 0.0
          %569 = vmatpush2.msra.mxu0 0.0
          %570 = vmatprep.subr.mxu0 0.0
          %571 = vmatpush2.msra.mxu0 0.0
          %572 = vmatprep.subr.mxu0 0.0
          %573 = vmatpush2.msra.mxu0 0.0
          %574 = vmatprep.subr.mxu0 0.0
          %575 = vmatpush2.msra.mxu0 0.0
          %576 = vmatprep.subr.mxu0 0.0
          %577 = vmatpush2.msra.mxu0 0.0
          %578 = vmatprep.subr.mxu0 0.0
          %579 = vmatpush2.msra.mxu0 0.0
          %580 = vmatprep.subr.mxu0 0.0
          %581 = vmatpush2.msra.mxu0 0.0
          %582 = vmatprep.subr.mxu0 0.0
          %583 = vmatpush2.msra.mxu0 0.0
          %584 = vmatprep.subr.mxu0 0.0
          %585 = vmatpush2.msra.mxu0 0.0
          %586 = vmatprep.subr.mxu0 0.0
          %587 = vmatpush2.msra.mxu0 0.0
          %588 = vmatprep.subr.mxu0 0.0
          %589 = vmatpush2.msra.mxu0 0.0
          %590 = vmatprep.subr.mxu0 0.0
          %591 = vmatpush2.msra.mxu0 0.0
          %592 = vmatprep.subr.mxu0 0.0
          %593 = vmatpush2.msra.mxu0 0.0
          %594 = vmatprep.subr.mxu0 0.0
          %595 = vmatpush2.msra.mxu0 0.0
          %596 = vmatprep.mubr.f32.mxu0 0.0
          %597 = vmatmul.mubr.f32.gmra.mxu0 %v502
          %v598 = vpop.f32.mrf.mxu0
          %v599 = vadd.f32 %v530, %v598
          %v600 = vpop.f32.mrf.mxu0
          %601 = vmatprep.mubr.f32.mxu0 0.0
          %602 = vmatmul.mubr.f32.gmra.mxu0 %v503
          %v603 = vpop.f32.mrf.mxu0
          %v604 = vadd.f32 %v530, %v603
          %v605 = vpop.f32.mrf.mxu0
          %606 = vmatprep.mubr.f32.mxu0 0.0
          %607 = vmatmul.mubr.f32.gmra.mxu0 %v504
          %v608 = vpop.f32.mrf.mxu0
          %v609 = vadd.f32 %v530, %v608
          %v610 = vpop.f32.mrf.mxu0
          %611 = vmatprep.mubr.f32.mxu0 0.0
          %612 = vmatmul.mubr.f32.gmra.mxu0 %v505
          %v613 = vpop.f32.mrf.mxu0
          %v614 = vadd.f32 %v530, %v613
          %v615 = vpop.f32.mrf.mxu0
          %616 = vmatprep.mubr.f32.mxu0 0.0
          %617 = vmatmul.mubr.f32.gmra.mxu0 %v506
          %v618 = vpop.f32.mrf.mxu0
          %v619 = vadd.f32 %v530, %v618
          %v620 = vpop.f32.mrf.mxu0
          %621 = vmatprep.mubr.f32.mxu0 0.0
          %622 = vmatmul.mubr.f32.gmra.mxu0 %v507
          %v623 = vpop.f32.mrf.mxu0
          %v624 = vadd.f32 %v530, %v623
          %v625 = vpop.f32.mrf.mxu0
          %626 = vmatprep.mubr.f32.mxu0 0.0
          %627 = vmatmul.mubr.f32.gmra.mxu0 %v508
          %v628 = vpop.f32.mrf.mxu0
          %v629 = vadd.f32 %v530, %v628
          %v630 = vpop.f32.mrf.mxu0
          %631 = vmatprep.mubr.f32.mxu0 0.0
          %632 = vmatmul.mubr.f32.gmra.mxu0 %v509
          %v633 = vpop.f32.mrf.mxu0
          %v634 = vadd.f32 %v530, %v633
          %v635 = vpop.f32.mrf.mxu0
          %636 = vdwg.mxu0
          %637 = vst [vmem:[#allocation2] sm:$0xff] %v599
          %638 = vst [vmem:[#allocation2 + $0x8] sm:$0xff] %v604
          %639 = vst [vmem:[#allocation2 + $0x10] sm:$0xff] %v609
          %640 = vst [vmem:[#allocation2 + $0x18] sm:$0xff] %v614
          %641 = vst [vmem:[#allocation2 + $0x20] sm:$0xff] %v619
          %642 = vst [vmem:[#allocation2 + $0x28] sm:$0xff] %v624
          %643 = vst [vmem:[#allocation2 + $0x30] sm:$0xff] %v629
          %644 = vst [vmem:[#allocation2 + $0x38] sm:$0xff] %v634
        $region64: #{tpu_custom_call.1} parent=47 // pred_fallthru
          _
        %v645 = vld [vmem:[%s302] sm:$0xff]
        %v646 = vld [vmem:[%s302 + $0x8] sm:$0xff]
        %v647 = vld [vmem:[%s302 + $0x10] sm:$0xff]
        %v648 = vld [vmem:[%s302 + $0x18] sm:$0xff]
        %v649 = vld [vmem:[%s302 + $0x20] sm:$0xff]
        %v650 = vld [vmem:[%s302 + $0x28] sm:$0xff]
        %v651 = vld [vmem:[%s302 + $0x30] sm:$0xff]
        %v652 = vld [vmem:[%s302 + $0x38] sm:$0xff]
        %v653 = vld [vmem:[%s302 + $0x40] sm:$0xff]
        %v654 = vld [vmem:[%s302 + $0x48] sm:$0xff]
        %v655 = vld [vmem:[%s302 + $0x50] sm:$0xff]
        %v656 = vld [vmem:[%s302 + $0x58] sm:$0xff]
        %v657 = vld [vmem:[%s302 + $0x60] sm:$0xff]
        %v658 = vld [vmem:[%s302 + $0x68] sm:$0xff]
        %v659 = vld [vmem:[%s302 + $0x70] sm:$0xff]
        %v660 = vld [vmem:[%s302 + $0x78] sm:$0xff]
        %p661 = scmp.lt.s32.totalorder %s25, 1
        %v662 = vlaneseq
        %v663 = vand.u32 %v662, 127
        %vm664 = vcmp.ge.s32.totalorder %v663, 96
        %v665 = vld [vmem:[#allocation2] sm:$0xff]
        %666 = vmatprep.subr.mxu0 0.0
        %667 = vmatpush1.msra.mxu0 %v660
        %668 = vmatprep.subr.mxu0 0.0
        %669 = vmatpush1.msra.mxu0 %v659
        %670 = vmatprep.subr.mxu0 0.0
        %671 = vmatpush1.msra.mxu0 %v658
        %672 = vmatprep.subr.mxu0 0.0
        %673 = vmatpush1.msra.mxu0 %v657
        %674 = vmatprep.subr.mxu0 0.0
        %675 = vmatpush1.msra.mxu0 %v656
        %676 = vmatprep.subr.mxu0 0.0
        %677 = vmatpush1.msra.mxu0 %v655
        %678 = vmatprep.subr.mxu0 0.0
        %679 = vmatpush1.msra.mxu0 %v654
        %680 = vmatprep.subr.mxu0 0.0
        %681 = vmatpush1.msra.mxu0 %v653
        %682 = vmatprep.subr.mxu0 0.0
        %683 = vmatpush1.msra.mxu0 %v652
        %684 = vmatprep.subr.mxu0 0.0
        %685 = vmatpush1.msra.mxu0 %v651
        %686 = vmatprep.subr.mxu0 0.0
        %687 = vmatpush1.msra.mxu0 %v650
        %688 = vmatprep.subr.mxu0 0.0
        %689 = vmatpush1.msra.mxu0 %v649
        %690 = vmatprep.subr.mxu0 0.0
        %691 = vmatpush1.msra.mxu0 %v648
        %692 = vmatprep.subr.mxu0 0.0
        %693 = vmatpush1.msra.mxu0 %v647
        %694 = vmatprep.subr.mxu0 0.0
        %695 = vmatpush1.msra.mxu0 %v646
        %696 = vmatprep.subr.mxu0 0.0
        %697 = vmatpush1.msra.mxu0 %v645
        %698 = vmatprep.subr.mxu0 0.0
        %699 = vmatpush2.msra.mxu0 0.0
        %700 = vmatprep.subr.mxu0 0.0
        %701 = vmatpush2.msra.mxu0 0.0
        %702 = vmatprep.subr.mxu0 0.0
        %703 = vmatpush2.msra.mxu0 0.0
        %704 = vmatprep.subr.mxu0 0.0
        %705 = vmatpush2.msra.mxu0 0.0
        %706 = vmatprep.subr.mxu0 0.0
        %707 = vmatpush2.msra.mxu0 0.0
        %708 = vmatprep.subr.mxu0 0.0
        %709 = vmatpush2.msra.mxu0 0.0
        %710 = vmatprep.subr.mxu0 0.0
        %711 = vmatpush2.msra.mxu0 0.0
        %712 = vmatprep.subr.mxu0 0.0
        %713 = vmatpush2.msra.mxu0 0.0
        %714 = vmatprep.subr.mxu0 0.0
        %715 = vmatpush2.msra.mxu0 0.0
        %716 = vmatprep.subr.mxu0 0.0
        %717 = vmatpush2.msra.mxu0 0.0
        %718 = vmatprep.subr.mxu0 0.0
        %719 = vmatpush2.msra.mxu0 0.0
        %720 = vmatprep.subr.mxu0 0.0
        %721 = vmatpush2.msra.mxu0 0.0
        %722 = vmatprep.subr.mxu0 0.0
        %723 = vmatpush2.msra.mxu0 0.0
        %724 = vmatprep.subr.mxu0 0.0
        %725 = vmatpush2.msra.mxu0 0.0
        %726 = vmatprep.subr.mxu0 0.0
        %727 = vmatpush2.msra.mxu0 0.0
        %728 = vmatprep.subr.mxu0 0.0
        %729 = vmatpush2.msra.mxu0 0.0
        %730 = vmatprep.mubr.f32.mxu0 0.0
        %731 = vmatmul.mubr.f32.gmra.mxu0 0.0
        %v732 = vpop.f32.mrf.mxu0
        %v733 = vadd.f32 0.0, %v732
        %v734 = vpop.f32.mrf.mxu0
        %735 = vdwg.mxu0
        %v736 = vadd.f32 %v665, %v733
        %v737 = vtanh.pop %v736
        %v738 = vxor.u32 %v736, 2147483648
        %v739 = vmul.f32 %v738, 1.442695
        %v740 = vpow.pop %v739
        %v741 = vadd.f32 %v740, 1.0
        %v742 = vrcp.pop %v741
        %v743 = vmul.f32 1.0, %v742
        %v744 = vsel %vm664, %v737, %v743
        %745 = vrot.lane.b32.xlu0 %v744, 96
        %v746 = vpop.permute.xlu0 %745
        %747 = vrot.lane.b32.xlu0 %v744, 64
        %v748 = vpop.permute.xlu0 %747
        %749 = vrot.lane.b32.xlu0 %v744, 32
        %v750 = vpop.permute.xlu0 %749
        %v751 = vmul.f32 %v744, 0.0
        %v752 = vmul.f32 %v746, %v750
        %v753 = vadd.f32 %v751, %v752
        %v754 = vtanh.pop %v753
        %v755 = vmul.f32 %v748, %v754
        // Predicated region
        $region65: #{tpu_custom_call.1} parent=47 // pred_check
          %p756 = pneg %p661
        $region66: #{tpu_custom_call.1} parent=47 // pred_check_branch
          %758 = sbr.rel (%p756) target = $region68
        $region67: #{tpu_custom_call.1} parent=47 // pred_region
          %759 = vst [vmem:[#allocation3] sm:$0xff] %v755
        $region68: #{tpu_custom_call.1} parent=47 // pred_fallthru
          _
        %s760 = scalar_lea.vmem [#allocation2], 8
        %v761 = vld [vmem:[%s760] sm:$0xff]
        %762 = vmatprep.subr.mxu0 0.0
        %763 = vmatpush1.msra.mxu0 %v660
        %764 = vmatprep.subr.mxu0 0.0
        %765 = vmatpush1.msra.mxu0 %v659
        %766 = vmatprep.subr.mxu0 0.0
        %767 = vmatpush1.msra.mxu0 %v658
        %768 = vmatprep.subr.mxu0 0.0
        %769 = vmatpush1.msra.mxu0 %v657
        %770 = vmatprep.subr.mxu0 0.0
        %771 = vmatpush1.msra.mxu0 %v656
        %772 = vmatprep.subr.mxu0 0.0
        %773 = vmatpush1.msra.mxu0 %v655
        %774 = vmatprep.subr.mxu0 0.0
        %775 = vmatpush1.msra.mxu0 %v654
        %776 = vmatprep.subr.mxu0 0.0
        %777 = vmatpush1.msra.mxu0 %v653
        %778 = vmatprep.subr.mxu0 0.0
        %779 = vmatpush1.msra.mxu0 %v652
        %780 = vmatprep.subr.mxu0 0.0
        %781 = vmatpush1.msra.mxu0 %v651
        %782 = vmatprep.subr.mxu0 0.0
        %783 = vmatpush1.msra.mxu0 %v650
        %784 = vmatprep.subr.mxu0 0.0
        %785 = vmatpush1.msra.mxu0 %v649
        %786 = vmatprep.subr.mxu0 0.0
        %787 = vmatpush1.msra.mxu0 %v648
        %788 = vmatprep.subr.mxu0 0.0
        %789 = vmatpush1.msra.mxu0 %v647
        %790 = vmatprep.subr.mxu0 0.0
        %791 = vmatpush1.msra.mxu0 %v646
        %792 = vmatprep.subr.mxu0 0.0
        %793 = vmatpush1.msra.mxu0 %v645
        %794 = vmatprep.subr.mxu0 0.0
        %795 = vmatpush2.msra.mxu0 0.0
        %796 = vmatprep.subr.mxu0 0.0
        %797 = vmatpush2.msra.mxu0 0.0
        %798 = vmatprep.subr.mxu0 0.0
        %799 = vmatpush2.msra.mxu0 0.0
        %800 = vmatprep.subr.mxu0 0.0
        %801 = vmatpush2.msra.mxu0 0.0
        %802 = vmatprep.subr.mxu0 0.0
        %803 = vmatpush2.msra.mxu0 0.0
        %804 = vmatprep.subr.mxu0 0.0
        %805 = vmatpush2.msra.mxu0 0.0
        %806 = vmatprep.subr.mxu0 0.0
        %807 = vmatpush2.msra.mxu0 0.0
        %808 = vmatprep.subr.mxu0 0.0
        %809 = vmatpush2.msra.mxu0 0.0
        %810 = vmatprep.subr.mxu0 0.0
        %811 = vmatpush2.msra.mxu0 0.0
        %812 = vmatprep.subr.mxu0 0.0
        %813 = vmatpush2.msra.mxu0 0.0
        %814 = vmatprep.subr.mxu0 0.0
        %815 = vmatpush2.msra.mxu0 0.0
        %816 = vmatprep.subr.mxu0 0.0
        %817 = vmatpush2.msra.mxu0 0.0
        %818 = vmatprep.subr.mxu0 0.0
        %819 = vmatpush2.msra.mxu0 0.0
        %820 = vmatprep.subr.mxu0 0.0
        %821 = vmatpush2.msra.mxu0 0.0
        %822 = vmatprep.subr.mxu0 0.0
        %823 = vmatpush2.msra.mxu0 0.0
        %824 = vmatprep.subr.mxu0 0.0
        %825 = vmatpush2.msra.mxu0 0.0
        %826 = vmatprep.mubr.f32.mxu0 0.0
        %827 = vmatmul.mubr.f32.gmra.mxu0 %v755
        %v828 = vpop.f32.mrf.mxu0
        %v829 = vadd.f32 0.0, %v828
        %v830 = vpop.f32.mrf.mxu0
        %831 = vdwg.mxu0
        %v832 = vadd.f32 %v761, %v829
        %v833 = vtanh.pop %v832
        %v834 = vxor.u32 %v832, 2147483648
        %v835 = vmul.f32 %v834, 1.442695
        %v836 = vpow.pop %v835
        %v837 = vadd.f32 %v836, 1.0
        %v838 = vrcp.pop %v837
        %v839 = vmul.f32 1.0, %v838
        %v840 = vsel %vm664, %v833, %v839
        %841 = vrot.lane.b32.xlu0 %v840, 96
        %v842 = vpop.permute.xlu0 %841
        %843 = vrot.lane.b32.xlu0 %v840, 64
        %v844 = vpop.permute.xlu0 %843
        %845 = vrot.lane.b32.xlu0 %v840, 32
        %v846 = vpop.permute.xlu0 %845
        %v847 = vmul.f32 %v840, %v753
        %v848 = vmul.f32 %v842, %v846
        %v849 = vadd.f32 %v847, %v848
        %v850 = vtanh.pop %v849
        %v851 = vmul.f32 %v844, %v850
        // Predicated region
        $region69: #{tpu_custom_call.1} parent=47 // pred_check
          %p852 = pneg %p661
        $region70: #{tpu_custom_call.1} parent=47 // pred_check_branch
          %854 = sbr.rel (%p852) target = $region72
        $region71: #{tpu_custom_call.1} parent=47 // pred_region
          %s855 = scalar_lea.vmem [#allocation3], 8
          %856 = vst [vmem:[%s855] sm:$0xff] %v851
        $region72: #{tpu_custom_call.1} parent=47 // pred_fallthru
          _
        %s857 = scalar_lea.vmem [#allocation2], 16
        %v858 = vld [vmem:[%s857] sm:$0xff]
        %859 = vmatprep.subr.mxu0 0.0
        %860 = vmatpush1.msra.mxu0 %v660
        %861 = vmatprep.subr.mxu0 0.0
        %862 = vmatpush1.msra.mxu0 %v659
        %863 = vmatprep.subr.mxu0 0.0
        %864 = vmatpush1.msra.mxu0 %v658
        %865 = vmatprep.subr.mxu0 0.0
        %866 = vmatpush1.msra.mxu0 %v657
        %867 = vmatprep.subr.mxu0 0.0
        %868 = vmatpush1.msra.mxu0 %v656
        %869 = vmatprep.subr.mxu0 0.0
        %870 = vmatpush1.msra.mxu0 %v655
        %871 = vmatprep.subr.mxu0 0.0
        %872 = vmatpush1.msra.mxu0 %v654
        %873 = vmatprep.subr.mxu0 0.0
        %874 = vmatpush1.msra.mxu0 %v653
        %875 = vmatprep.subr.mxu0 0.0
        %876 = vmatpush1.msra.mxu0 %v652
        %877 = vmatprep.subr.mxu0 0.0
        %878 = vmatpush1.msra.mxu0 %v651
        %879 = vmatprep.subr.mxu0 0.0
        %880 = vmatpush1.msra.mxu0 %v650
        %881 = vmatprep.subr.mxu0 0.0
        %882 = vmatpush1.msra.mxu0 %v649
        %883 = vmatprep.subr.mxu0 0.0
        %884 = vmatpush1.msra.mxu0 %v648
        %885 = vmatprep.subr.mxu0 0.0
        %886 = vmatpush1.msra.mxu0 %v647
        %887 = vmatprep.subr.mxu0 0.0
        %888 = vmatpush1.msra.mxu0 %v646
        %889 = vmatprep.subr.mxu0 0.0
        %890 = vmatpush1.msra.mxu0 %v645
        %891 = vmatprep.subr.mxu0 0.0
        %892 = vmatpush2.msra.mxu0 0.0
        %893 = vmatprep.subr.mxu0 0.0
        %894 = vmatpush2.msra.mxu0 0.0
        %895 = vmatprep.subr.mxu0 0.0
        %896 = vmatpush2.msra.mxu0 0.0
        %897 = vmatprep.subr.mxu0 0.0
        %898 = vmatpush2.msra.mxu0 0.0
        %899 = vmatprep.subr.mxu0 0.0
        %900 = vmatpush2.msra.mxu0 0.0
        %901 = vmatprep.subr.mxu0 0.0
        %902 = vmatpush2.msra.mxu0 0.0
        %903 = vmatprep.subr.mxu0 0.0
        %904 = vmatpush2.msra.mxu0 0.0
        %905 = vmatprep.subr.mxu0 0.0
        %906 = vmatpush2.msra.mxu0 0.0
        %907 = vmatprep.subr.mxu0 0.0
        %908 = vmatpush2.msra.mxu0 0.0
        %909 = vmatprep.subr.mxu0 0.0
        %910 = vmatpush2.msra.mxu0 0.0
        %911 = vmatprep.subr.mxu0 0.0
        %912 = vmatpush2.msra.mxu0 0.0
        %913 = vmatprep.subr.mxu0 0.0
        %914 = vmatpush2.msra.mxu0 0.0
        %915 = vmatprep.subr.mxu0 0.0
        %916 = vmatpush2.msra.mxu0 0.0
        %917 = vmatprep.subr.mxu0 0.0
        %918 = vmatpush2.msra.mxu0 0.0
        %919 = vmatprep.subr.mxu0 0.0
        %920 = vmatpush2.msra.mxu0 0.0
        %921 = vmatprep.subr.mxu0 0.0
        %922 = vmatpush2.msra.mxu0 0.0
        %923 = vmatprep.mubr.f32.mxu0 0.0
        %924 = vmatmul.mubr.f32.gmra.mxu0 %v851
        %v925 = vpop.f32.mrf.mxu0
        %v926 = vadd.f32 0.0, %v925
        %v927 = vpop.f32.mrf.mxu0
        %928 = vdwg.mxu0
        %v929 = vadd.f32 %v858, %v926
        %v930 = vtanh.pop %v929
        %v931 = vxor.u32 %v929, 2147483648
        %v932 = vmul.f32 %v931, 1.442695
        %v933 = vpow.pop %v932
        %v934 = vadd.f32 %v933, 1.0
        %v935 = vrcp.pop %v934
        %v936 = vmul.f32 1.0, %v935
        %v937 = vsel %vm664, %v930, %v936
        %938 = vrot.lane.b32.xlu0 %v937, 96
        %v939 = vpop.permute.xlu0 %938
        %940 = vrot.lane.b32.xlu0 %v937, 64
        %v941 = vpop.permute.xlu0 %940
        %942 = vrot.lane.b32.xlu0 %v937, 32
        %v943 = vpop.permute.xlu0 %942
        %v944 = vmul.f32 %v937, %v849
        %v945 = vmul.f32 %v939, %v943
        %v946 = vadd.f32 %v944, %v945
        %v947 = vtanh.pop %v946
        %v948 = vmul.f32 %v941, %v947
        // Predicated region
        $region73: #{tpu_custom_call.1} parent=47 // pred_check
          %p949 = pneg %p661
        $region74: #{tpu_custom_call.1} parent=47 // pred_check_branch
          %951 = sbr.rel (%p949) target = $region76
        $region75: #{tpu_custom_call.1} parent=47 // pred_region
          %s952 = scalar_lea.vmem [#allocation3], 16
          %953 = vst [vmem:[%s952] sm:$0xff] %v948
        $region76: #{tpu_custom_call.1} parent=47 // pred_fallthru
          _
        %s954 = scalar_lea.vmem [#allocation2], 24
        %v955 = vld [vmem:[%s954] sm:$0xff]
        %956 = vmatprep.subr.mxu0 0.0
        %957 = vmatpush1.msra.mxu0 %v660
        %958 = vmatprep.subr.mxu0 0.0
        %959 = vmatpush1.msra.mxu0 %v659
        %960 = vmatprep.subr.mxu0 0.0
        %961 = vmatpush1.msra.mxu0 %v658
        %962 = vmatprep.subr.mxu0 0.0
        %963 = vmatpush1.msra.mxu0 %v657
        %964 = vmatprep.subr.mxu0 0.0
        %965 = vmatpush1.msra.mxu0 %v656
        %966 = vmatprep.subr.mxu0 0.0
        %967 = vmatpush1.msra.mxu0 %v655
        %968 = vmatprep.subr.mxu0 0.0
        %969 = vmatpush1.msra.mxu0 %v654
        %970 = vmatprep.subr.mxu0 0.0
        %971 = vmatpush1.msra.mxu0 %v653
        %972 = vmatprep.subr.mxu0 0.0
        %973 = vmatpush1.msra.mxu0 %v652
        %974 = vmatprep.subr.mxu0 0.0
        %975 = vmatpush1.msra.mxu0 %v651
        %976 = vmatprep.subr.mxu0 0.0
        %977 = vmatpush1.msra.mxu0 %v650
        %978 = vmatprep.subr.mxu0 0.0
        %979 = vmatpush1.msra.mxu0 %v649
        %980 = vmatprep.subr.mxu0 0.0
        %981 = vmatpush1.msra.mxu0 %v648
        %982 = vmatprep.subr.mxu0 0.0
        %983 = vmatpush1.msra.mxu0 %v647
        %984 = vmatprep.subr.mxu0 0.0
        %985 = vmatpush1.msra.mxu0 %v646
        %986 = vmatprep.subr.mxu0 0.0
        %987 = vmatpush1.msra.mxu0 %v645
        %988 = vmatprep.subr.mxu0 0.0
        %989 = vmatpush2.msra.mxu0 0.0
        %990 = vmatprep.subr.mxu0 0.0
        %991 = vmatpush2.msra.mxu0 0.0
        %992 = vmatprep.subr.mxu0 0.0
        %993 = vmatpush2.msra.mxu0 0.0
        %994 = vmatprep.subr.mxu0 0.0
        %995 = vmatpush2.msra.mxu0 0.0
        %996 = vmatprep.subr.mxu0 0.0
        %997 = vmatpush2.msra.mxu0 0.0
        %998 = vmatprep.subr.mxu0 0.0
        %999 = vmatpush2.msra.mxu0 0.0
        %1000 = vmatprep.subr.mxu0 0.0
        %1001 = vmatpush2.msra.mxu0 0.0
        %1002 = vmatprep.subr.mxu0 0.0
        %1003 = vmatpush2.msra.mxu0 0.0
        %1004 = vmatprep.subr.mxu0 0.0
        %1005 = vmatpush2.msra.mxu0 0.0
        %1006 = vmatprep.subr.mxu0 0.0
        %1007 = vmatpush2.msra.mxu0 0.0
        %1008 = vmatprep.subr.mxu0 0.0
        %1009 = vmatpush2.msra.mxu0 0.0
        %1010 = vmatprep.subr.mxu0 0.0
        %1011 = vmatpush2.msra.mxu0 0.0
        %1012 = vmatprep.subr.mxu0 0.0
        %1013 = vmatpush2.msra.mxu0 0.0
        %1014 = vmatprep.subr.mxu0 0.0
        %1015 = vmatpush2.msra.mxu0 0.0
        %1016 = vmatprep.subr.mxu0 0.0
        %1017 = vmatpush2.msra.mxu0 0.0
        %1018 = vmatprep.subr.mxu0 0.0
        %1019 = vmatpush2.msra.mxu0 0.0
        %1020 = vmatprep.mubr.f32.mxu0 0.0
        %1021 = vmatmul.mubr.f32.gmra.mxu0 %v948
        %v1022 = vpop.f32.mrf.mxu0
        %v1023 = vadd.f32 0.0, %v1022
        %v1024 = vpop.f32.mrf.mxu0
        %1025 = vdwg.mxu0
        %v1026 = vadd.f32 %v955, %v1023
        %v1027 = vtanh.pop %v1026
        %v1028 = vxor.u32 %v1026, 2147483648
        %v1029 = vmul.f32 %v1028, 1.442695
        %v1030 = vpow.pop %v1029
        %v1031 = vadd.f32 %v1030, 1.0
        %v1032 = vrcp.pop %v1031
        %v1033 = vmul.f32 1.0, %v1032
        %v1034 = vsel %vm664, %v1027, %v1033
        %1035 = vrot.lane.b32.xlu0 %v1034, 96
        %v1036 = vpop.permute.xlu0 %1035
        %1037 = vrot.lane.b32.xlu0 %v1034, 64
        %v1038 = vpop.permute.xlu0 %1037
        %1039 = vrot.lane.b32.xlu0 %v1034, 32
        %v1040 = vpop.permute.xlu0 %1039
        %v1041 = vmul.f32 %v1034, %v946
        %v1042 = vmul.f32 %v1036, %v1040
        %v1043 = vadd.f32 %v1041, %v1042
        %v1044 = vtanh.pop %v1043
        %v1045 = vmul.f32 %v1038, %v1044
        // Predicated region
        $region77: #{tpu_custom_call.1} parent=47 // pred_check
          %p1046 = pneg %p661
        $region78: #{tpu_custom_call.1} parent=47 // pred_check_branch
          %1048 = sbr.rel (%p1046) target = $region80
        $region79: #{tpu_custom_call.1} parent=47 // pred_region
          %s1049 = scalar_lea.vmem [#allocation3], 24
          %1050 = vst [vmem:[%s1049] sm:$0xff] %v1045
        $region80: #{tpu_custom_call.1} parent=47 // pred_fallthru
          _
        %s1051 = scalar_lea.vmem [#allocation2], 32
        %v1052 = vld [vmem:[%s1051] sm:$0xff]
        %1053 = vmatprep.subr.mxu0 0.0
        %1054 = vmatpush1.msra.mxu0 %v660
        %1055 = vmatprep.subr.mxu0 0.0
        %1056 = vmatpush1.msra.mxu0 %v659
        %1057 = vmatprep.subr.mxu0 0.0
        %1058 = vmatpush1.msra.mxu0 %v658
        %1059 = vmatprep.subr.mxu0 0.0
        %1060 = vmatpush1.msra.mxu0 %v657
        %1061 = vmatprep.subr.mxu0 0.0
        %1062 = vmatpush1.msra.mxu0 %v656
        %1063 = vmatprep.subr.mxu0 0.0
        %1064 = vmatpush1.msra.mxu0 %v655
        %1065 = vmatprep.subr.mxu0 0.0
        %1066 = vmatpush1.msra.mxu0 %v654
        %1067 = vmatprep.subr.mxu0 0.0
        %1068 = vmatpush1.msra.mxu0 %v653
        %1069 = vmatprep.subr.mxu0 0.0
        %1070 = vmatpush1.msra.mxu0 %v652
        %1071 = vmatprep.subr.mxu0 0.0
        %1072 = vmatpush1.msra.mxu0 %v651
        %1073 = vmatprep.subr.mxu0 0.0
        %1074 = vmatpush1.msra.mxu0 %v650
        %1075 = vmatprep.subr.mxu0 0.0
        %1076 = vmatpush1.msra.mxu0 %v649
        %1077 = vmatprep.subr.mxu0 0.0
        %1078 = vmatpush1.msra.mxu0 %v648
        %1079 = vmatprep.subr.mxu0 0.0
        %1080 = vmatpush1.msra.mxu0 %v647
        %1081 = vmatprep.subr.mxu0 0.0
        %1082 = vmatpush1.msra.mxu0 %v646
        %1083 = vmatprep.subr.mxu0 0.0
        %1084 = vmatpush1.msra.mxu0 %v645
        %1085 = vmatprep.subr.mxu0 0.0
        %1086 = vmatpush2.msra.mxu0 0.0
        %1087 = vmatprep.subr.mxu0 0.0
        %1088 = vmatpush2.msra.mxu0 0.0
        %1089 = vmatprep.subr.mxu0 0.0
        %1090 = vmatpush2.msra.mxu0 0.0
        %1091 = vmatprep.subr.mxu0 0.0
        %1092 = vmatpush2.msra.mxu0 0.0
        %1093 = vmatprep.subr.mxu0 0.0
        %1094 = vmatpush2.msra.mxu0 0.0
        %1095 = vmatprep.subr.mxu0 0.0
        %1096 = vmatpush2.msra.mxu0 0.0
        %1097 = vmatprep.subr.mxu0 0.0
        %1098 = vmatpush2.msra.mxu0 0.0
        %1099 = vmatprep.subr.mxu0 0.0
        %1100 = vmatpush2.msra.mxu0 0.0
        %1101 = vmatprep.subr.mxu0 0.0
        %1102 = vmatpush2.msra.mxu0 0.0
        %1103 = vmatprep.subr.mxu0 0.0
        %1104 = vmatpush2.msra.mxu0 0.0
        %1105 = vmatprep.subr.mxu0 0.0
        %1106 = vmatpush2.msra.mxu0 0.0
        %1107 = vmatprep.subr.mxu0 0.0
        %1108 = vmatpush2.msra.mxu0 0.0
        %1109 = vmatprep.subr.mxu0 0.0
        %1110 = vmatpush2.msra.mxu0 0.0
        %1111 = vmatprep.subr.mxu0 0.0
        %1112 = vmatpush2.msra.mxu0 0.0
        %1113 = vmatprep.subr.mxu0 0.0
        %1114 = vmatpush2.msra.mxu0 0.0
        %1115 = vmatprep.subr.mxu0 0.0
        %1116 = vmatpush2.msra.mxu0 0.0
        %1117 = vmatprep.mubr.f32.mxu0 0.0
        %1118 = vmatmul.mubr.f32.gmra.mxu0 %v1045
        %v1119 = vpop.f32.mrf.mxu0
        %v1120 = vadd.f32 0.0, %v1119
        %v1121 = vpop.f32.mrf.mxu0
        %1122 = vdwg.mxu0
        %v1123 = vadd.f32 %v1052, %v1120
        %v1124 = vtanh.pop %v1123
        %v1125 = vxor.u32 %v1123, 2147483648
        %v1126 = vmul.f32 %v1125, 1.442695
        %v1127 = vpow.pop %v1126
        %v1128 = vadd.f32 %v1127, 1.0
        %v1129 = vrcp.pop %v1128
        %v1130 = vmul.f32 1.0, %v1129
        %v1131 = vsel %vm664, %v1124, %v1130
        %1132 = vrot.lane.b32.xlu0 %v1131, 96
        %v1133 = vpop.permute.xlu0 %1132
        %1134 = vrot.lane.b32.xlu0 %v1131, 64
        %v1135 = vpop.permute.xlu0 %1134
        %1136 = vrot.lane.b32.xlu0 %v1131, 32
        %v1137 = vpop.permute.xlu0 %1136
        %v1138 = vmul.f32 %v1131, %v1043
        %v1139 = vmul.f32 %v1133, %v1137
        %v1140 = vadd.f32 %v1138, %v1139
        %v1141 = vtanh.pop %v1140
        %v1142 = vmul.f32 %v1135, %v1141
        // Predicated region
        $region81: #{tpu_custom_call.1} parent=47 // pred_check
          %p1143 = pneg %p661
        $region82: #{tpu_custom_call.1} parent=47 // pred_check_branch
          %1145 = sbr.rel (%p1143) target = $region84
        $region83: #{tpu_custom_call.1} parent=47 // pred_region
          %s1146 = scalar_lea.vmem [#allocation3], 32
          %1147 = vst [vmem:[%s1146] sm:$0xff] %v1142
        $region84: #{tpu_custom_call.1} parent=47 // pred_fallthru
          _
        %s1148 = scalar_lea.vmem [#allocation2], 40
        %v1149 = vld [vmem:[%s1148] sm:$0xff]
        %1150 = vmatprep.subr.mxu0 0.0
        %1151 = vmatpush1.msra.mxu0 %v660
        %1152 = vmatprep.subr.mxu0 0.0
        %1153 = vmatpush1.msra.mxu0 %v659
        %1154 = vmatprep.subr.mxu0 0.0
        %1155 = vmatpush1.msra.mxu0 %v658
        %1156 = vmatprep.subr.mxu0 0.0
        %1157 = vmatpush1.msra.mxu0 %v657
        %1158 = vmatprep.subr.mxu0 0.0
        %1159 = vmatpush1.msra.mxu0 %v656
        %1160 = vmatprep.subr.mxu0 0.0
        %1161 = vmatpush1.msra.mxu0 %v655
        %1162 = vmatprep.subr.mxu0 0.0
        %1163 = vmatpush1.msra.mxu0 %v654
        %1164 = vmatprep.subr.mxu0 0.0
        %1165 = vmatpush1.msra.mxu0 %v653
        %1166 = vmatprep.subr.mxu0 0.0
        %1167 = vmatpush1.msra.mxu0 %v652
        %1168 = vmatprep.subr.mxu0 0.0
        %1169 = vmatpush1.msra.mxu0 %v651
        %1170 = vmatprep.subr.mxu0 0.0
        %1171 = vmatpush1.msra.mxu0 %v650
        %1172 = vmatprep.subr.mxu0 0.0
        %1173 = vmatpush1.msra.mxu0 %v649
        %1174 = vmatprep.subr.mxu0 0.0
        %1175 = vmatpush1.msra.mxu0 %v648
        %1176 = vmatprep.subr.mxu0 0.0
        %1177 = vmatpush1.msra.mxu0 %v647
        %1178 = vmatprep.subr.mxu0 0.0
        %1179 = vmatpush1.msra.mxu0 %v646
        %1180 = vmatprep.subr.mxu0 0.0
        %1181 = vmatpush1.msra.mxu0 %v645
        %1182 = vmatprep.subr.mxu0 0.0
        %1183 = vmatpush2.msra.mxu0 0.0
        %1184 = vmatprep.subr.mxu0 0.0
        %1185 = vmatpush2.msra.mxu0 0.0
        %1186 = vmatprep.subr.mxu0 0.0
        %1187 = vmatpush2.msra.mxu0 0.0
        %1188 = vmatprep.subr.mxu0 0.0
        %1189 = vmatpush2.msra.mxu0 0.0
        %1190 = vmatprep.subr.mxu0 0.0
        %1191 = vmatpush2.msra.mxu0 0.0
        %1192 = vmatprep.subr.mxu0 0.0
        %1193 = vmatpush2.msra.mxu0 0.0
        %1194 = vmatprep.subr.mxu0 0.0
        %1195 = vmatpush2.msra.mxu0 0.0
        %1196 = vmatprep.subr.mxu0 0.0
        %1197 = vmatpush2.msra.mxu0 0.0
        %1198 = vmatprep.subr.mxu0 0.0
        %1199 = vmatpush2.msra.mxu0 0.0
        %1200 = vmatprep.subr.mxu0 0.0
        %1201 = vmatpush2.msra.mxu0 0.0
        %1202 = vmatprep.subr.mxu0 0.0
        %1203 = vmatpush2.msra.mxu0 0.0
        %1204 = vmatprep.subr.mxu0 0.0
        %1205 = vmatpush2.msra.mxu0 0.0
        %1206 = vmatprep.subr.mxu0 0.0
        %1207 = vmatpush2.msra.mxu0 0.0
        %1208 = vmatprep.subr.mxu0 0.0
        %1209 = vmatpush2.msra.mxu0 0.0
        %1210 = vmatprep.subr.mxu0 0.0
        %1211 = vmatpush2.msra.mxu0 0.0
        %1212 = vmatprep.subr.mxu0 0.0
        %1213 = vmatpush2.msra.mxu0 0.0
        %1214 = vmatprep.mubr.f32.mxu0 0.0
        %1215 = vmatmul.mubr.f32.gmra.mxu0 %v1142
        %v1216 = vpop.f32.mrf.mxu0
        %v1217 = vadd.f32 0.0, %v1216
        %v1218 = vpop.f32.mrf.mxu0
        %1219 = vdwg.mxu0
        %v1220 = vadd.f32 %v1149, %v1217
        %v1221 = vtanh.pop %v1220
        %v1222 = vxor.u32 %v1220, 2147483648
        %v1223 = vmul.f32 %v1222, 1.442695
        %v1224 = vpow.pop %v1223
        %v1225 = vadd.f32 %v1224, 1.0
        %v1226 = vrcp.pop %v1225
        %v1227 = vmul.f32 1.0, %v1226
        %v1228 = vsel %vm664, %v1221, %v1227
        %1229 = vrot.lane.b32.xlu0 %v1228, 96
        %v1230 = vpop.permute.xlu0 %1229
        %1231 = vrot.lane.b32.xlu0 %v1228, 64
        %v1232 = vpop.permute.xlu0 %1231
        %1233 = vrot.lane.b32.xlu0 %v1228, 32
        %v1234 = vpop.permute.xlu0 %1233
        %v1235 = vmul.f32 %v1228, %v1140
        %v1236 = vmul.f32 %v1230, %v1234
        %v1237 = vadd.f32 %v1235, %v1236
        %v1238 = vtanh.pop %v1237
        %v1239 = vmul.f32 %v1232, %v1238
        // Predicated region
        $region85: #{tpu_custom_call.1} parent=47 // pred_check
          %p1240 = pneg %p661
        $region86: #{tpu_custom_call.1} parent=47 // pred_check_branch
          %1242 = sbr.rel (%p1240) target = $region88
        $region87: #{tpu_custom_call.1} parent=47 // pred_region
          %s1243 = scalar_lea.vmem [#allocation3], 40
          %1244 = vst [vmem:[%s1243] sm:$0xff] %v1239
        $region88: #{tpu_custom_call.1} parent=47 // pred_fallthru
          _
        %s1245 = scalar_lea.vmem [#allocation2], 48
        %v1246 = vld [vmem:[%s1245] sm:$0xff]
        %1247 = vmatprep.subr.mxu0 0.0
        %1248 = vmatpush1.msra.mxu0 %v660
        %1249 = vmatprep.subr.mxu0 0.0
        %1250 = vmatpush1.msra.mxu0 %v659
        %1251 = vmatprep.subr.mxu0 0.0
        %1252 = vmatpush1.msra.mxu0 %v658
        %1253 = vmatprep.subr.mxu0 0.0
        %1254 = vmatpush1.msra.mxu0 %v657
        %1255 = vmatprep.subr.mxu0 0.0
        %1256 = vmatpush1.msra.mxu0 %v656
        %1257 = vmatprep.subr.mxu0 0.0
        %1258 = vmatpush1.msra.mxu0 %v655
        %1259 = vmatprep.subr.mxu0 0.0
        %1260 = vmatpush1.msra.mxu0 %v654
        %1261 = vmatprep.subr.mxu0 0.0
        %1262 = vmatpush1.msra.mxu0 %v653
        %1263 = vmatprep.subr.mxu0 0.0
        %1264 = vmatpush1.msra.mxu0 %v652
        %1265 = vmatprep.subr.mxu0 0.0
        %1266 = vmatpush1.msra.mxu0 %v651
        %1267 = vmatprep.subr.mxu0 0.0
        %1268 = vmatpush1.msra.mxu0 %v650
        %1269 = vmatprep.subr.mxu0 0.0
        %1270 = vmatpush1.msra.mxu0 %v649
        %1271 = vmatprep.subr.mxu0 0.0
        %1272 = vmatpush1.msra.mxu0 %v648
        %1273 = vmatprep.subr.mxu0 0.0
        %1274 = vmatpush1.msra.mxu0 %v647
        %1275 = vmatprep.subr.mxu0 0.0
        %1276 = vmatpush1.msra.mxu0 %v646
        %1277 = vmatprep.subr.mxu0 0.0
        %1278 = vmatpush1.msra.mxu0 %v645
        %1279 = vmatprep.subr.mxu0 0.0
        %1280 = vmatpush2.msra.mxu0 0.0
        %1281 = vmatprep.subr.mxu0 0.0
        %1282 = vmatpush2.msra.mxu0 0.0
        %1283 = vmatprep.subr.mxu0 0.0
        %1284 = vmatpush2.msra.mxu0 0.0
        %1285 = vmatprep.subr.mxu0 0.0
        %1286 = vmatpush2.msra.mxu0 0.0
        %1287 = vmatprep.subr.mxu0 0.0
        %1288 = vmatpush2.msra.mxu0 0.0
        %1289 = vmatprep.subr.mxu0 0.0
        %1290 = vmatpush2.msra.mxu0 0.0
        %1291 = vmatprep.subr.mxu0 0.0
        %1292 = vmatpush2.msra.mxu0 0.0
        %1293 = vmatprep.subr.mxu0 0.0
        %1294 = vmatpush2.msra.mxu0 0.0
        %1295 = vmatprep.subr.mxu0 0.0
        %1296 = vmatpush2.msra.mxu0 0.0
        %1297 = vmatprep.subr.mxu0 0.0
        %1298 = vmatpush2.msra.mxu0 0.0
        %1299 = vmatprep.subr.mxu0 0.0
        %1300 = vmatpush2.msra.mxu0 0.0
        %1301 = vmatprep.subr.mxu0 0.0
        %1302 = vmatpush2.msra.mxu0 0.0
        %1303 = vmatprep.subr.mxu0 0.0
        %1304 = vmatpush2.msra.mxu0 0.0
        %1305 = vmatprep.subr.mxu0 0.0
        %1306 = vmatpush2.msra.mxu0 0.0
        %1307 = vmatprep.subr.mxu0 0.0
        %1308 = vmatpush2.msra.mxu0 0.0
        %1309 = vmatprep.subr.mxu0 0.0
        %1310 = vmatpush2.msra.mxu0 0.0
        %1311 = vmatprep.mubr.f32.mxu0 0.0
        %1312 = vmatmul.mubr.f32.gmra.mxu0 %v1239
        %v1313 = vpop.f32.mrf.mxu0
        %v1314 = vadd.f32 0.0, %v1313
        %v1315 = vpop.f32.mrf.mxu0
        %1316 = vdwg.mxu0
        %v1317 = vadd.f32 %v1246, %v1314
        %v1318 = vtanh.pop %v1317
        %v1319 = vxor.u32 %v1317, 2147483648
        %v1320 = vmul.f32 %v1319, 1.442695
        %v1321 = vpow.pop %v1320
        %v1322 = vadd.f32 %v1321, 1.0
        %v1323 = vrcp.pop %v1322
        %v1324 = vmul.f32 1.0, %v1323
        %v1325 = vsel %vm664, %v1318, %v1324
        %1326 = vrot.lane.b32.xlu0 %v1325, 96
        %v1327 = vpop.permute.xlu0 %1326
        %1328 = vrot.lane.b32.xlu0 %v1325, 64
        %v1329 = vpop.permute.xlu0 %1328
        %1330 = vrot.lane.b32.xlu0 %v1325, 32
        %v1331 = vpop.permute.xlu0 %1330
        %v1332 = vmul.f32 %v1325, %v1237
        %v1333 = vmul.f32 %v1327, %v1331
        %v1334 = vadd.f32 %v1332, %v1333
        %v1335 = vtanh.pop %v1334
        %v1336 = vmul.f32 %v1329, %v1335
        // Predicated region
        $region89: #{tpu_custom_call.1} parent=47 // pred_check
          %p1337 = pneg %p661
        $region90: #{tpu_custom_call.1} parent=47 // pred_check_branch
          %1339 = sbr.rel (%p1337) target = $region92
        $region91: #{tpu_custom_call.1} parent=47 // pred_region
          %s1340 = scalar_lea.vmem [#allocation3], 48
          %1341 = vst [vmem:[%s1340] sm:$0xff] %v1336
        $region92: #{tpu_custom_call.1} parent=47 // pred_fallthru
          _
        %s1342 = scalar_lea.vmem [#allocation2], 56
        %v1343 = vld [vmem:[%s1342] sm:$0xff]
        %1344 = vmatprep.subr.mxu0 0.0
        %1345 = vmatpush1.msra.mxu0 %v660
        %1346 = vmatprep.subr.mxu0 0.0
        %1347 = vmatpush1.msra.mxu0 %v659
        %1348 = vmatprep.subr.mxu0 0.0
        %1349 = vmatpush1.msra.mxu0 %v658
        %1350 = vmatprep.subr.mxu0 0.0
        %1351 = vmatpush1.msra.mxu0 %v657
        %1352 = vmatprep.subr.mxu0 0.0
        %1353 = vmatpush1.msra.mxu0 %v656
        %1354 = vmatprep.subr.mxu0 0.0
        %1355 = vmatpush1.msra.mxu0 %v655
        %1356 = vmatprep.subr.mxu0 0.0
        %1357 = vmatpush1.msra.mxu0 %v654
        %1358 = vmatprep.subr.mxu0 0.0
        %1359 = vmatpush1.msra.mxu0 %v653
        %1360 = vmatprep.subr.mxu0 0.0
        %1361 = vmatpush1.msra.mxu0 %v652
        %1362 = vmatprep.subr.mxu0 0.0
        %1363 = vmatpush1.msra.mxu0 %v651
        %1364 = vmatprep.subr.mxu0 0.0
        %1365 = vmatpush1.msra.mxu0 %v650
        %1366 = vmatprep.subr.mxu0 0.0
        %1367 = vmatpush1.msra.mxu0 %v649
        %1368 = vmatprep.subr.mxu0 0.0
        %1369 = vmatpush1.msra.mxu0 %v648
        %1370 = vmatprep.subr.mxu0 0.0
        %1371 = vmatpush1.msra.mxu0 %v647
        %1372 = vmatprep.subr.mxu0 0.0
        %1373 = vmatpush1.msra.mxu0 %v646
        %1374 = vmatprep.subr.mxu0 0.0
        %1375 = vmatpush1.msra.mxu0 %v645
        %1376 = vmatprep.subr.mxu0 0.0
        %1377 = vmatpush2.msra.mxu0 0.0
        %1378 = vmatprep.subr.mxu0 0.0
        %1379 = vmatpush2.msra.mxu0 0.0
        %1380 = vmatprep.subr.mxu0 0.0
        %1381 = vmatpush2.msra.mxu0 0.0
        %1382 = vmatprep.subr.mxu0 0.0
        %1383 = vmatpush2.msra.mxu0 0.0
        %1384 = vmatprep.subr.mxu0 0.0
        %1385 = vmatpush2.msra.mxu0 0.0
        %1386 = vmatprep.subr.mxu0 0.0
        %1387 = vmatpush2.msra.mxu0 0.0
        %1388 = vmatprep.subr.mxu0 0.0
        %1389 = vmatpush2.msra.mxu0 0.0
        %1390 = vmatprep.subr.mxu0 0.0
        %1391 = vmatpush2.msra.mxu0 0.0
        %1392 = vmatprep.subr.mxu0 0.0
        %1393 = vmatpush2.msra.mxu0 0.0
        %1394 = vmatprep.subr.mxu0 0.0
        %1395 = vmatpush2.msra.mxu0 0.0
        %1396 = vmatprep.subr.mxu0 0.0
        %1397 = vmatpush2.msra.mxu0 0.0
        %1398 = vmatprep.subr.mxu0 0.0
        %1399 = vmatpush2.msra.mxu0 0.0
        %1400 = vmatprep.subr.mxu0 0.0
        %1401 = vmatpush2.msra.mxu0 0.0
        %1402 = vmatprep.subr.mxu0 0.0
        %1403 = vmatpush2.msra.mxu0 0.0
        %1404 = vmatprep.subr.mxu0 0.0
        %1405 = vmatpush2.msra.mxu0 0.0
        %1406 = vmatprep.subr.mxu0 0.0
        %1407 = vmatpush2.msra.mxu0 0.0
        %1408 = vmatprep.mubr.f32.mxu0 0.0
        %1409 = vmatmul.mubr.f32.gmra.mxu0 %v1336
        %v1410 = vpop.f32.mrf.mxu0
        %v1411 = vadd.f32 0.0, %v1410
        %v1412 = vpop.f32.mrf.mxu0
        %1413 = vdwg.mxu0
        %v1414 = vadd.f32 %v1343, %v1411
        %v1415 = vtanh.pop %v1414
        %v1416 = vxor.u32 %v1414, 2147483648
        %v1417 = vmul.f32 %v1416, 1.442695
        %v1418 = vpow.pop %v1417
        %v1419 = vadd.f32 %v1418, 1.0
        %v1420 = vrcp.pop %v1419
        %v1421 = vmul.f32 1.0, %v1420
        %v1422 = vsel %vm664, %v1415, %v1421
        %1423 = vrot.lane.b32.xlu0 %v1422, 96
        %v1424 = vpop.permute.xlu0 %1423
        %1425 = vrot.lane.b32.xlu0 %v1422, 64
        %v1426 = vpop.permute.xlu0 %1425
        %1427 = vrot.lane.b32.xlu0 %v1422, 32
        %v1428 = vpop.permute.xlu0 %1427
        %v1429 = vmul.f32 %v1422, %v1334
        %v1430 = vmul.f32 %v1424, %v1428
        %v1431 = vadd.f32 %v1429, %v1430
        %v1432 = vtanh.pop %v1431
        %v1433 = vmul.f32 %v1426, %v1432
        // Predicated region
        $region93: #{tpu_custom_call.1} parent=47 // pred_check
          %p1434 = pneg %p661
        $region94: #{tpu_custom_call.1} parent=47 // pred_check_branch
          %1436 = sbr.rel (%p1434) target = $region96
        $region95: #{tpu_custom_call.1} parent=47 // pred_region
          %s1437 = scalar_lea.vmem [#allocation3], 56
          %1438 = vst [vmem:[%s1437] sm:$0xff] %v1433
        $region96: #{tpu_custom_call.1} parent=47 // pred_fallthru
          _
        %p1439 = scmp.eq.s32.totalorder %s25, 1
        // Predicated region
        $region97: #{tpu_custom_call.1} parent=47 // pred_check
          %p1440 = pneg %p1439
        $region98: #{tpu_custom_call.1} parent=47 // pred_check_branch
          %1442 = sbr.rel (%p1440) target = $region100
        $region99: #{tpu_custom_call.1} parent=47 // pred_region
          %vm1443 = vcmask 254976
          %v1444 = vsel %vm1443, %v1433, 0.0
          %1445 = vadd.xlane.f32.xlu0 %v1444
          %v1446 = vpop.xlane.xlu0 %1445
          %v1447 = vrcp.pop 32.0
          %v1448 = vmul.f32 %v1446, %v1447
          %v1449 = vsub.f32 %v1433, %v1448
          %v1450 = vmul.f32 %v1449, %v1449
          %v1451 = vsel %vm1443, %v1450, 0.0
          %1452 = vadd.xlane.f32.xlu0 %v1451
          %v1453 = vpop.xlane.xlu0 %1452
          %v1454 = vmul.f32 %v1453, %v1447
          %v1455 = vadd.f32 %v1454, 1e-05
          %v1456 = vrsqrt.pop %v1455
          %v1457 = vmul.f32 %v1449, %v1456
          %v1458 = vld [vmem:[%s5] sm:$0x1]
          %v1460 = vlaneseq
          %v1461 = vshrl.u32 %v1460, 7
          %v1462 = vsub.s32 0, %v1461
          %v1463 = vrot.slane %v1458, %v1462
          %v1465 = vmul.f32 %v1457, %v1463
          %v1466 = vld [vmem:[%s6] sm:$0x1]
          %v1468 = vlaneseq
          %v1469 = vshrl.u32 %v1468, 7
          %v1470 = vsub.s32 0, %v1469
          %v1471 = vrot.slane %v1466, %v1470
          %v1473 = vadd.f32 %v1465, %v1471
          %1474 = vst.msk [vmem:[#allocation9] sm:$0x3] %vm1443, %v1473
        $region100: #{tpu_custom_call.1} parent=47 // pred_fallthru
          _
        // Predicated region
        $region101: #{tpu_custom_call.1} parent=47 // pred_check
          %p1475 = pneg %p200
        $region102: #{tpu_custom_call.1} parent=47 // pred_check_branch
          %1477 = sbr.rel (%p1475) target = $region104
        $region103: #{tpu_custom_call.1} parent=47 // pred_region
          %s1479 = ssub.s32 32, 32
          %1480 = vsyncadd [#allocation6], %s1479
          %s1482 = sshll.u32 [#allocation9], 4
          %s1483 = int_to_ptr.vmem [resolvable:$true] %s1482
          %1485 = dma.vmem_to_hbm [thread:$0]  %s1483, 32, %s7, [#allocation6]
        $region104: #{tpu_custom_call.1} parent=47 // pred_fallthru
          _
        // Predicated region
        $region105: #{tpu_custom_call.1} parent=47 // pred_check
          %p1486 = pneg %p200
        $region106: #{tpu_custom_call.1} parent=47 // pred_check_branch
          %1488 = sbr.rel (%p1486) target = $region108
        $region107: #{tpu_custom_call.1} parent=47 // pred_region
          %1489 = dma.done [#allocation6], 32
        $region108: #{tpu_custom_call.1} parent=47 // pred_fallthru
          _
      $region48: #{tpu_custom_call.1} parent=5 // pred_fallthru
        _
      %p1490 = scmp.le.s32.totalorder 2, %s20
      // Predicated region
      $region109: #{tpu_custom_call.1} parent=5 // pred_check
        %p1491 = pneg %p1490
      $region110: #{tpu_custom_call.1} parent=5 // pred_check_branch
        %1493 = sbr.rel (%p1491) target = $region112
      $region111: #{tpu_custom_call.1} parent=5 // pred_region
        %s1494 = ssub.s32 %s20, 2
      $region112: #{tpu_custom_call.1} parent=5 // pred_fallthru
        _
    $region6: #{tpu_custom_call.1} parent=1 // loop_footer
      %s24 = sadd.s32 1, %s20
    $region7: #{tpu_custom_call.1} parent=1 // loop_footer_branch
      %19 = sbr.rel target = $region3
    $region8: #{tpu_custom_call.1} parent=1 // loop_exit
      _
    %1495 = vsyncpa [#allocation5], 1
    %s1496 = scalar_lea.sflag [#allocation5], 1
    %1497 = vsyncpa %s1496, 1
    %1498 = vsyncpa [#allocation8], 1
    %s1499 = scalar_lea.sflag [#allocation8], 1
    %1500 = vsyncpa %s1499, 1
    %1501 = vsyncpa [#allocation6], 1
    %s1502 = scalar_lea.sflag [#allocation6], 1
    %1503 = vsyncpa %s1502, 1

</llo_original>
